<compile_context>
chip_gen: v6e
topology: v6e:2x2x1
jax: 0.10.0
libtpu: 0.0.40
codegen_flags: <defaults>
</compile_context>

<pallas_src>
import functools

import jax
import jax.numpy as jnp
from jax.experimental import pallas as pl
from jax.experimental.pallas import tpu as pltpu


# ----------------------------------------------------------------------------
# Fused Pallas kernel (both branches, full forward)
# ----------------------------------------------------------------------------
def _mlinear_fused_kernel(x_ref, w_x_ref, b_x_ref, w_hh_ref, w_ih_ref, b_ref,
                          w_dec_ref, b_dec_ref, out_ref, h_hist_ref,
                          *, seq_len, pred_len, hidden_pad, batch):
    B, S, P = batch, seq_len, pred_len
    H2 = 2 * hidden_pad                  # fused (lane-padded) hidden width == 128
    t_hist = S + P - 1                   # number of kept hidden states

    w_hh = w_hh_ref[...]                 # (2Hp, 8Hp)  recurrent weights (grouped, scaled)
    w_ih = w_ih_ref[...]                 # (2Hp, 8Hp)  free-running input weights
    b_g = b_ref[...]                     # (1, 8Hp)    free-running bias

    # (1) ALL input-side gate contributions in one MXU pass, off the recurrence.
    #     x_ref is time-major flattened: row t*B + b  ->  x[b, t, :].
    pre = jnp.dot(x_ref[...], w_x_ref[...],
                  preferred_element_type=jnp.float32) + b_x_ref[...]     # (S*B, 8Hp)

    def act(g):
        # Gate columns are grouped [i | f | g | o]; each group is H2 == 128 lanes wide
        # (both branches + lane padding) so every slice below is a whole vreg -> free.
        # i/f/o columns of all weights/biases were pre-scaled by 0.5, so ONE tanh over
        # the whole block gives sigmoid(x) = 0.5*(1 + tanh(x/2)) for i/f/o and plain
        # tanh for the cell gate.
        a = jnp.tanh(g)
        i = 0.5 * a[:, 0 * H2:1 * H2] + 0.5
        f = 0.5 * a[:, 1 * H2:2 * H2] + 0.5
        gc = a[:, 2 * H2:3 * H2]
        o = 0.5 * a[:, 3 * H2:4 * H2] + 0.5
        return i, f, gc, o

    # (2) Step 0 (zero initial state).  Its hidden state is dropped by outputs[:,1:,:],
    #     so it is neither stored nor decoded; with h0 = c0 = 0 there is no w_hh term.
    i0, _f0, g0, o0 = act(pre[0:B, :])
    c = i0 * g0
    h = o0 * jnp.tanh(c)

    # (3) Remaining observed steps — fully unrolled (static trip count), only
    #     h @ w_hh sits on the serial critical path.  ONE dense (B, H2) time-major
    #     history store per step (off the recurrence dependency chain).
    for t in range(1, S):
        g = pre[t * B:(t + 1) * B, :] + jnp.dot(
            h, w_hh, preferred_element_type=jnp.float32)
        i_g, f_g, g_g, o_g = act(g)
        c = f_g * c + i_g * g_g
        h = o_g * jnp.tanh(c)
        j = t - 1
        h_hist_ref[j * B:(j + 1) * B, :] = h

    # (4) Free-running prediction: the PyTorch module calls the LSTM again WITHOUT
    #     passing state, so every step restarts from a zero (h, c) with the previous
    #     hidden state as its single input — hence no f*c term.
    for s in range(P):
        g = jnp.dot(h, w_ih, preferred_element_type=jnp.float32) + b_g
        i_g, _f_g, g_g, o_g = act(g)
        c2 = i_g * g_g
        h = o_g * jnp.tanh(c2)
        j = S - 1 + s
        h_hist_ref[j * B:(j + 1) * B, :] = h

    # (5) Decoder hoisted out of the recurrence: one matmul over the whole hidden
    #     history + one lane-dense (128-wide) store.  Block-diagonal w_dec also performs
    #     the channel concat of the two branches.  All t_hist*B rows of h_hist_ref were
    #     written above: (S-1) + P stores of B rows each == t_hist * B.
    dec = jnp.dot(h_hist_ref[...], w_dec_ref[...],
                  preferred_element_type=jnp.float32) + b_dec_ref[...]   # (t_hist*B, 128)
    out_ref[...] = dec


# ----------------------------------------------------------------------------
# One-time weight fusion / folding / lane-padding (trace-time; plain JAX)
# ----------------------------------------------------------------------------
def fuse_params(lin_params, quat_params, hidden, hidden_pad):
    """Fold encoders into the LSTM input weights, fuse the two branches, lane-pad.

    Per-branch hidden is padded hidden -> hidden_pad with zeros so each fused gate
    group is 2*hidden_pad (=128) lanes wide.  Gate columns are grouped
    [i | f | g | o]; within a group the layout is [b1 (H) | 0 | b2 (H) | 0].
    Sigmoid (i/f/o) columns are pre-scaled by 0.5 so the kernel can use a single tanh.
    """
    H, Hp = hidden, hidden_pad
    H2 = 2 * Hp
    prec = jax.lax.Precision.HIGHEST
    (we1, be1, wih1, whh1, b1, wd1, bd1) = lin_params
    (we2, be2, wih2, whh2, b2, wd2, bd2) = quat_params

    wx1 = jnp.dot(we1, wih1, precision=prec)            # (3, 4H)
    wx2 = jnp.dot(we2, wih2, precision=prec)            # (4, 4H)
    bx1 = jnp.dot(be1, wih1, precision=prec) + b1       # (1, 4H)
    bx2 = jnp.dot(be2, wih2, precision=prec) + b2       # (1, 4H)

    def group_cols(m1, m2, row_pad):
        # m1: (r1, 4H), m2: (r2, 4H) gate-major per branch -> fused grouped/padded.
        # Rows: if row_pad, placed into the padded fused hidden layout
        # [b1 (H) | 0 | b2 (H) | 0] (2*Hp rows); else simply stacked [r1; r2].
        r1, r2 = m1.shape[0], m2.shape[0]
        if row_pad:
            rows, off1, off2 = 2 * Hp, 0, Hp
        else:
            rows, off1, off2 = r1 + r2, 0, r1
        blocks = []
        for gi in range(4):
            blk = jnp.zeros((rows, H2), jnp.float32)
            blk = blk.at[off1:off1 + r1, 0:H].set(m1[:, gi * H:(gi + 1) * H])
            blk = blk.at[off2:off2 + r2, Hp:Hp + H].set(m2[:, gi * H:(gi + 1) * H])
            blocks.append(blk)
        return jnp.concatenate(blocks, axis=1)

    def group_bias(v1, v2):
        parts = []
        for gi in range(4):
            p = jnp.zeros((1, H2), jnp.float32)
            p = p.at[:, 0:H].set(v1[:, gi * H:(gi + 1) * H])
            p = p.at[:, Hp:Hp + H].set(v2[:, gi * H:(gi + 1) * H])
            parts.append(p)
        return jnp.concatenate(parts, axis=1)

    w_x = group_cols(wx1, wx2, row_pad=False)    # (7, 8Hp)
    b_x = group_bias(bx1, bx2)                   # (1, 8Hp)
    w_hh = group_cols(whh1, whh2, row_pad=True)  # (2Hp, 8Hp)
    w_ih = group_cols(wih1, wih2, row_pad=True)  # (2Hp, 8Hp)
    b_g = group_bias(b1, b2)                     # (1, 8Hp)

    # Pre-scale sigmoid gate columns (i, f, o) by 0.5  ->  sigmoid via single tanh.
    scale = jnp.concatenate([jnp.full((1, H2), 0.5), jnp.full((1, H2), 0.5),
                             jnp.ones((1, H2)), jnp.full((1, H2), 0.5)],
                            axis=1).astype(jnp.float32)
    w_x, b_x, w_hh, w_ih, b_g = (w_x * scale, b_x * scale,
                                 w_hh * scale, w_ih * scale, b_g * scale)

    # Block-diagonal decoder (also performs the final channel concat), lane-padded to
    # 128 output columns so the kernel's final store is an unmasked vst.
    c1, c2 = wd1.shape[1], wd2.shape[1]
    c_pad = 128
    w_dec = jnp.zeros((H2, c_pad), jnp.float32)
    w_dec = w_dec.at[0:H, 0:c1].set(wd1).at[Hp:Hp + H, c1:c1 + c2].set(wd2)
    b_dec = jnp.zeros((1, c_pad), jnp.float32)
    b_dec = b_dec.at[:, 0:c1].set(bd1).at[:, c1:c1 + c2].set(bd2)
    return (w_x, b_x, w_hh, w_ih, b_g, w_dec, b_dec)


# ----------------------------------------------------------------------------
# Wrapper
# ----------------------------------------------------------------------------
def model_forward(x, fused_params, *, pred_len, hidden_pad, c_out):
    """x: (B, S, 7) batch-first (like the PyTorch module). Returns (B, S+pred_len-1, 7)."""
    (w_x, b_x, w_hh, w_ih, b_g, w_dec, b_dec) = fused_params
    B, S, C = x.shape
    c_pad = w_dec.shape[1]
    t_hist = S + pred_len - 1

    # Tiny (~0.5 KB) layout op: time-major flattened rows for the in-kernel pre-gate
    # matmul; kept in XLA on purpose (cheaper than any in-kernel gather at this size).
    x_tm = jnp.transpose(x, (1, 0, 2)).reshape(S * B, C)

    kernel = functools.partial(_mlinear_fused_kernel, seq_len=S, pred_len=pred_len,
                               hidden_pad=hidden_pad, batch=B)
    out_padded = pl.pallas_call(
        kernel,
        out_shape=jax.ShapeDtypeStruct((t_hist * B, c_pad), jnp.float32),
        in_specs=[pl.BlockSpec(memory_space=pltpu.MemorySpace.VMEM)] * 8,
        out_specs=pl.BlockSpec(memory_space=pltpu.MemorySpace.VMEM),
        scratch_shapes=[pltpu.VMEM((t_hist * B, 2 * hidden_pad), jnp.float32)],
    )(x_tm, w_x, b_x, w_hh, w_ih, b_g, w_dec, b_dec)

    # Time-major history -> batch-first output; drop lane padding.  Sub-KB XLA op.
    out = out_padded.reshape(t_hist, B, c_pad)[:, :, :c_out]
    return jnp.transpose(out, (1, 0, 2))


# ----------------------------------------------------------------------------
# Pure-JAX reference (unfused, standard sigmoid LSTM) — correctness check only
# ----------------------------------------------------------------------------
def _branch_ref(x_btc, params, seq_len, pred_len, hidden):
    w_enc, b_enc, w_ih, w_hh, b, w_dec, b_dec = params
    H = hidden
    B = x_btc.shape[0]

    def cell(inp, h, c):
        g = inp @ w_ih + h @ w_hh + b
        i = jax.nn.sigmoid(g[:, :H])
        f = jax.nn.sigmoid(g[:, H:2 * H])
        gg = jnp.tanh(g[:, 2 * H:3 * H])
        o = jax.nn.sigmoid(g[:, 3 * H:])
        c2 = f * c + i * gg
        return o * jnp.tanh(c2), c2

    enc = x_btc @ w_enc + b_enc
    h = jnp.zeros((B, H), jnp.float32)
    c = jnp.zeros((B, H), jnp.float32)
    hs = []
    for t in range(seq_len):
        h, c = cell(enc[:, t], h, c)
        hs.append(h)
    for _ in range(pred_len):
        h, _ = cell(h, jnp.zeros((B, H), jnp.float32), jnp.zeros((B, H), jnp.float32))
        hs.append(h)
    hid = jnp.stack(hs, axis=1)
    return hid @ w_dec + b_dec


def model_ref(x, lin_params, quat_params, *, seq_len, pred_len, hidden):
    lx = _branch_ref(x[:, :, :3], lin_params, seq_len, pred_len, hidden)
    rx = _branch_ref(x[:, :, 3:], quat_params, seq_len, pred_len, hidden)
    return jnp.concatenate([lx[:, 1:, :], rx[:, 1:, :]], axis=2)


# ----------------------------------------------------------------------------
# Deterministic parameter construction (synthetic, PyTorch-style uniform bounds)
# ----------------------------------------------------------------------------
def make_branch_params(key, c_in, hidden):
    ks = jax.random.split(key, 7)
    enc_b = 1.0 / jnp.sqrt(c_in)
    lstm_b = 1.0 / jnp.sqrt(hidden)
    dec_b = 1.0 / jnp.sqrt(hidden)
    w_enc = jax.random.uniform(ks[0], (c_in, hidden), jnp.float32, -enc_b, enc_b)
    b_enc = jax.random.uniform(ks[1], (1, hidden), jnp.float32, -enc_b, enc_b)
    w_ih = jax.random.uniform(ks[2], (hidden, 4 * hidden), jnp.float32, -lstm_b, lstm_b)
    w_hh = jax.random.uniform(ks[3], (hidden, 4 * hidden), jnp.float32, -lstm_b, lstm_b)
    b = jax.random.uniform(ks[4], (1, 4 * hidden), jnp.float32, -lstm_b, lstm_b)
    w_dec = jax.random.uniform(ks[5], (hidden, c_in), jnp.float32, -dec_b, dec_b)
    b_dec = jax.random.uniform(ks[6], (1, c_in), jnp.float32, -dec_b, dec_b)
    return (w_enc, b_enc, w_ih, w_hh, b, w_dec, b_dec)


if __name__ == "__main__":
    # small config consistent with the module: enc_in=7 -> channels (3, 4)
    B, SEQ_LEN, PRED_LEN, HIDDEN, ENC_IN = 2, 8, 4, 32, 7
    # lane-pad each branch's hidden so one fused gate group is exactly 128 lanes
    HIDDEN_PAD = -(-HIDDEN // 64) * 64

    root = jax.random.PRNGKey(0)
    kx, k1, k2 = jax.random.split(root, 3)
    x = jax.random.normal(kx, (B, SEQ_LEN, ENC_IN), jnp.float32)

    lin_params = make_branch_params(k1, 3, HIDDEN)
    quat_params = make_branch_params(k2, 4, HIDDEN)

    # One-time weight folding / branch fusion / padding (cached in a real deployment).
    fused = fuse_params(lin_params, quat_params, HIDDEN, HIDDEN_PAD)

    fwd = jax.jit(functools.partial(model_forward, pred_len=PRED_LEN,
                                    hidden_pad=HIDDEN_PAD, c_out=ENC_IN))
    out = jax.block_until_ready(fwd(x, fused))

    assert out.shape == (B, SEQ_LEN + PRED_LEN - 1, ENC_IN), out.shape

    ref = model_ref(x, lin_params, quat_params, seq_len=SEQ_LEN,
                    pred_len=PRED_LEN, hidden=HIDDEN)
    max_err = float(jnp.max(jnp.abs(out - ref)))
    assert jnp.allclose(out, ref, atol=5e-4, rtol=5e-4), max_err

    print("KERNEL_OK")
</pallas_src>

<mosaic_0001>
module attributes {stable_mosaic.version = 11 : i64} {
  func.func @_mlinear_fused_kernel(%arg0: memref<16x7xf32, #tpu.memory_space<vmem>>, %arg1: memref<7x512xf32, #tpu.memory_space<vmem>>, %arg2: memref<1x512xf32, #tpu.memory_space<vmem>>, %arg3: memref<128x512xf32, #tpu.memory_space<vmem>>, %arg4: memref<128x512xf32, #tpu.memory_space<vmem>>, %arg5: memref<1x512xf32, #tpu.memory_space<vmem>>, %arg6: memref<128x128xf32, #tpu.memory_space<vmem>>, %arg7: memref<1x128xf32, #tpu.memory_space<vmem>>, %arg8: memref<22x128xf32, #tpu.memory_space<vmem>>, %arg9: memref<22x128xf32, #tpu.memory_space<vmem>>) attributes {dimension_semantics = [], scalar_prefetch = 0 : i64, scratch_operands = 1 : i64, tpu.core_type = #tpu.core_type<tc>} {
    %c0 = arith.constant 0 : index
    %c0_0 = arith.constant 0 : index
    %0 = vector.load %arg3[%c0, %c0_0] : memref<128x512xf32, #tpu.memory_space<vmem>>, vector<128x512xf32>
    %c0_1 = arith.constant 0 : index
    %c0_2 = arith.constant 0 : index
    %1 = vector.load %arg4[%c0_1, %c0_2] : memref<128x512xf32, #tpu.memory_space<vmem>>, vector<128x512xf32>
    %c0_3 = arith.constant 0 : index
    %c0_4 = arith.constant 0 : index
    %2 = vector.load %arg5[%c0_3, %c0_4] : memref<1x512xf32, #tpu.memory_space<vmem>>, vector<1x512xf32>
    %c0_5 = arith.constant 0 : index
    %c0_6 = arith.constant 0 : index
    %3 = vector.load %arg0[%c0_5, %c0_6] : memref<16x7xf32, #tpu.memory_space<vmem>>, vector<16x7xf32>
    %c0_7 = arith.constant 0 : index
    %c0_8 = arith.constant 0 : index
    %4 = vector.load %arg1[%c0_7, %c0_8] : memref<7x512xf32, #tpu.memory_space<vmem>>, vector<7x512xf32>
    %cst = arith.constant dense<0.000000e+00> : vector<16x512xf32>
    %5 = tpu.matmul %3, %4, %cst {dimension_numbers = #tpu.dot_dimension_numbers<[1], [0], [0], [1], [0, 0, 1, 1], [], []>} : vector<16x7xf32>, vector<7x512xf32>, vector<16x512xf32> -> vector<16x512xf32>
    %c0_9 = arith.constant 0 : index
    %c0_10 = arith.constant 0 : index
    %6 = vector.load %arg2[%c0_9, %c0_10] : memref<1x512xf32, #tpu.memory_space<vmem>>, vector<1x512xf32>
    %7 = vector.broadcast %6 : vector<1x512xf32> to vector<16x512xf32>
    %8 = arith.addf %5, %7 : vector<16x512xf32>
    %9 = vector.extract_strided_slice %8 {offsets = [0, 0], sizes = [2, 512], strides = [1, 1]} : vector<16x512xf32> to vector<2x512xf32>
    %10 = math.tanh %9 : vector<2x512xf32>
    %11 = vector.extract_strided_slice %10 {offsets = [0, 0], sizes = [2, 128], strides = [1, 1]} : vector<2x512xf32> to vector<2x128xf32>
    %cst_11 = arith.constant 5.000000e-01 : f32
    %12 = vector.broadcast %cst_11 : f32 to vector<2x128xf32>
    %13 = arith.mulf %12, %11 : vector<2x128xf32>
    %cst_12 = arith.constant 5.000000e-01 : f32
    %14 = vector.broadcast %cst_12 : f32 to vector<2x128xf32>
    %15 = arith.addf %13, %14 : vector<2x128xf32>
    %16 = vector.extract_strided_slice %10 {offsets = [0, 256], sizes = [2, 128], strides = [1, 1]} : vector<2x512xf32> to vector<2x128xf32>
    %17 = vector.extract_strided_slice %10 {offsets = [0, 384], sizes = [2, 128], strides = [1, 1]} : vector<2x512xf32> to vector<2x128xf32>
    %cst_13 = arith.constant 5.000000e-01 : f32
    %18 = vector.broadcast %cst_13 : f32 to vector<2x128xf32>
    %19 = arith.mulf %18, %17 : vector<2x128xf32>
    %cst_14 = arith.constant 5.000000e-01 : f32
    %20 = vector.broadcast %cst_14 : f32 to vector<2x128xf32>
    %21 = arith.addf %19, %20 : vector<2x128xf32>
    %22 = arith.mulf %15, %16 : vector<2x128xf32>
    %23 = math.tanh %22 : vector<2x128xf32>
    %24 = arith.mulf %21, %23 : vector<2x128xf32>
    %25 = vector.extract_strided_slice %8 {offsets = [2, 0], sizes = [2, 512], strides = [1, 1]} : vector<16x512xf32> to vector<2x512xf32>
    %cst_15 = arith.constant dense<0.000000e+00> : vector<2x512xf32>
    %26 = tpu.matmul %24, %0, %cst_15 {dimension_numbers = #tpu.dot_dimension_numbers<[1], [0], [0], [1], [0, 0, 1, 1], [], []>} : vector<2x128xf32>, vector<128x512xf32>, vector<2x512xf32> -> vector<2x512xf32>
    %27 = arith.addf %25, %26 : vector<2x512xf32>
    %28 = math.tanh %27 : vector<2x512xf32>
    %29 = vector.extract_strided_slice %28 {offsets = [0, 0], sizes = [2, 128], strides = [1, 1]} : vector<2x512xf32> to vector<2x128xf32>
    %cst_16 = arith.constant 5.000000e-01 : f32
    %30 = vector.broadcast %cst_16 : f32 to vector<2x128xf32>
    %31 = arith.mulf %30, %29 : vector<2x128xf32>
    %cst_17 = arith.constant 5.000000e-01 : f32
    %32 = vector.broadcast %cst_17 : f32 to vector<2x128xf32>
    %33 = arith.addf %31, %32 : vector<2x128xf32>
    %34 = vector.extract_strided_slice %28 {offsets = [0, 128], sizes = [2, 128], strides = [1, 1]} : vector<2x512xf32> to vector<2x128xf32>
    %cst_18 = arith.constant 5.000000e-01 : f32
    %35 = vector.broadcast %cst_18 : f32 to vector<2x128xf32>
    %36 = arith.mulf %35, %34 : vector<2x128xf32>
    %cst_19 = arith.constant 5.000000e-01 : f32
    %37 = vector.broadcast %cst_19 : f32 to vector<2x128xf32>
    %38 = arith.addf %36, %37 : vector<2x128xf32>
    %39 = vector.extract_strided_slice %28 {offsets = [0, 256], sizes = [2, 128], strides = [1, 1]} : vector<2x512xf32> to vector<2x128xf32>
    %40 = vector.extract_strided_slice %28 {offsets = [0, 384], sizes = [2, 128], strides = [1, 1]} : vector<2x512xf32> to vector<2x128xf32>
    %cst_20 = arith.constant 5.000000e-01 : f32
    %41 = vector.broadcast %cst_20 : f32 to vector<2x128xf32>
    %42 = arith.mulf %41, %40 : vector<2x128xf32>
    %cst_21 = arith.constant 5.000000e-01 : f32
    %43 = vector.broadcast %cst_21 : f32 to vector<2x128xf32>
    %44 = arith.addf %42, %43 : vector<2x128xf32>
    %45 = arith.mulf %38, %22 : vector<2x128xf32>
    %46 = arith.mulf %33, %39 : vector<2x128xf32>
    %47 = arith.addf %45, %46 : vector<2x128xf32>
    %48 = math.tanh %47 : vector<2x128xf32>
    %49 = arith.mulf %44, %48 : vector<2x128xf32>
    %c0_22 = arith.constant 0 : index
    %c0_23 = arith.constant 0 : index
    %50 = vector.load %arg9[%c0_22, %c0_23] : memref<22x128xf32, #tpu.memory_space<vmem>>, vector<2x128xf32>
    tpu.vector_store %arg9[%c0_22, %c0_23], %49 {strides = array<i32>} : memref<22x128xf32, #tpu.memory_space<vmem>>, vector<2x128xf32>,
    %51 = vector.extract_strided_slice %8 {offsets = [4, 0], sizes = [2, 512], strides = [1, 1]} : vector<16x512xf32> to vector<2x512xf32>
    %cst_24 = arith.constant dense<0.000000e+00> : vector<2x512xf32>
    %52 = tpu.matmul %49, %0, %cst_24 {dimension_numbers = #tpu.dot_dimension_numbers<[1], [0], [0], [1], [0, 0, 1, 1], [], []>} : vector<2x128xf32>, vector<128x512xf32>, vector<2x512xf32> -> vector<2x512xf32>
    %53 = arith.addf %51, %52 : vector<2x512xf32>
    %54 = math.tanh %53 : vector<2x512xf32>
    %55 = vector.extract_strided_slice %54 {offsets = [0, 0], sizes = [2, 128], strides = [1, 1]} : vector<2x512xf32> to vector<2x128xf32>
    %cst_25 = arith.constant 5.000000e-01 : f32
    %56 = vector.broadcast %cst_25 : f32 to vector<2x128xf32>
    %57 = arith.mulf %56, %55 : vector<2x128xf32>
    %cst_26 = arith.constant 5.000000e-01 : f32
    %58 = vector.broadcast %cst_26 : f32 to vector<2x128xf32>
    %59 = arith.addf %57, %58 : vector<2x128xf32>
    %60 = vector.extract_strided_slice %54 {offsets = [0, 128], sizes = [2, 128], strides = [1, 1]} : vector<2x512xf32> to vector<2x128xf32>
    %cst_27 = arith.constant 5.000000e-01 : f32
    %61 = vector.broadcast %cst_27 : f32 to vector<2x128xf32>
    %62 = arith.mulf %61, %60 : vector<2x128xf32>
    %cst_28 = arith.constant 5.000000e-01 : f32
    %63 = vector.broadcast %cst_28 : f32 to vector<2x128xf32>
    %64 = arith.addf %62, %63 : vector<2x128xf32>
    %65 = vector.extract_strided_slice %54 {offsets = [0, 256], sizes = [2, 128], strides = [1, 1]} : vector<2x512xf32> to vector<2x128xf32>
    %66 = vector.extract_strided_slice %54 {offsets = [0, 384], sizes = [2, 128], strides = [1, 1]} : vector<2x512xf32> to vector<2x128xf32>
    %cst_29 = arith.constant 5.000000e-01 : f32
    %67 = vector.broadcast %cst_29 : f32 to vector<2x128xf32>
    %68 = arith.mulf %67, %66 : vector<2x128xf32>
    %cst_30 = arith.constant 5.000000e-01 : f32
    %69 = vector.broadcast %cst_30 : f32 to vector<2x128xf32>
    %70 = arith.addf %68, %69 : vector<2x128xf32>
    %71 = arith.mulf %64, %47 : vector<2x128xf32>
    %72 = arith.mulf %59, %65 : vector<2x128xf32>
    %73 = arith.addf %71, %72 : vector<2x128xf32>
    %74 = math.tanh %73 : vector<2x128xf32>
    %75 = arith.mulf %70, %74 : vector<2x128xf32>
    %c2 = arith.constant 2 : index
    %c0_31 = arith.constant 0 : index
    %76 = vector.load %arg9[%c2, %c0_31] : memref<22x128xf32, #tpu.memory_space<vmem>>, vector<2x128xf32>
    tpu.vector_store %arg9[%c2, %c0_31], %75 {strides = array<i32>} : memref<22x128xf32, #tpu.memory_space<vmem>>, vector<2x128xf32>,
    %77 = vector.extract_strided_slice %8 {offsets = [6, 0], sizes = [2, 512], strides = [1, 1]} : vector<16x512xf32> to vector<2x512xf32>
    %cst_32 = arith.constant dense<0.000000e+00> : vector<2x512xf32>
    %78 = tpu.matmul %75, %0, %cst_32 {dimension_numbers = #tpu.dot_dimension_numbers<[1], [0], [0], [1], [0, 0, 1, 1], [], []>} : vector<2x128xf32>, vector<128x512xf32>, vector<2x512xf32> -> vector<2x512xf32>
    %79 = arith.addf %77, %78 : vector<2x512xf32>
    %80 = math.tanh %79 : vector<2x512xf32>
    %81 = vector.extract_strided_slice %80 {offsets = [0, 0], sizes = [2, 128], strides = [1, 1]} : vector<2x512xf32> to vector<2x128xf32>
    %cst_33 = arith.constant 5.000000e-01 : f32
    %82 = vector.broadcast %cst_33 : f32 to vector<2x128xf32>
    %83 = arith.mulf %82, %81 : vector<2x128xf32>
    %cst_34 = arith.constant 5.000000e-01 : f32
    %84 = vector.broadcast %cst_34 : f32 to vector<2x128xf32>
    %85 = arith.addf %83, %84 : vector<2x128xf32>
    %86 = vector.extract_strided_slice %80 {offsets = [0, 128], sizes = [2, 128], strides = [1, 1]} : vector<2x512xf32> to vector<2x128xf32>
    %cst_35 = arith.constant 5.000000e-01 : f32
    %87 = vector.broadcast %cst_35 : f32 to vector<2x128xf32>
    %88 = arith.mulf %87, %86 : vector<2x128xf32>
    %cst_36 = arith.constant 5.000000e-01 : f32
    %89 = vector.broadcast %cst_36 : f32 to vector<2x128xf32>
    %90 = arith.addf %88, %89 : vector<2x128xf32>
    %91 = vector.extract_strided_slice %80 {offsets = [0, 256], sizes = [2, 128], strides = [1, 1]} : vector<2x512xf32> to vector<2x128xf32>
    %92 = vector.extract_strided_slice %80 {offsets = [0, 384], sizes = [2, 128], strides = [1, 1]} : vector<2x512xf32> to vector<2x128xf32>
    %cst_37 = arith.constant 5.000000e-01 : f32
    %93 = vector.broadcast %cst_37 : f32 to vector<2x128xf32>
    %94 = arith.mulf %93, %92 : vector<2x128xf32>
    %cst_38 = arith.constant 5.000000e-01 : f32
    %95 = vector.broadcast %cst_38 : f32 to vector<2x128xf32>
    %96 = arith.addf %94, %95 : vector<2x128xf32>
    %97 = arith.mulf %90, %73 : vector<2x128xf32>
    %98 = arith.mulf %85, %91 : vector<2x128xf32>
    %99 = arith.addf %97, %98 : vector<2x128xf32>
    %100 = math.tanh %99 : vector<2x128xf32>
    %101 = arith.mulf %96, %100 : vector<2x128xf32>
    %c4 = arith.constant 4 : index
    %c0_39 = arith.constant 0 : index
    %102 = vector.load %arg9[%c4, %c0_39] : memref<22x128xf32, #tpu.memory_space<vmem>>, vector<2x128xf32>
    tpu.vector_store %arg9[%c4, %c0_39], %101 {strides = array<i32>} : memref<22x128xf32, #tpu.memory_space<vmem>>, vector<2x128xf32>,
    %103 = vector.extract_strided_slice %8 {offsets = [8, 0], sizes = [2, 512], strides = [1, 1]} : vector<16x512xf32> to vector<2x512xf32>
    %cst_40 = arith.constant dense<0.000000e+00> : vector<2x512xf32>
    %104 = tpu.matmul %101, %0, %cst_40 {dimension_numbers = #tpu.dot_dimension_numbers<[1], [0], [0], [1], [0, 0, 1, 1], [], []>} : vector<2x128xf32>, vector<128x512xf32>, vector<2x512xf32> -> vector<2x512xf32>
    %105 = arith.addf %103, %104 : vector<2x512xf32>
    %106 = math.tanh %105 : vector<2x512xf32>
    %107 = vector.extract_strided_slice %106 {offsets = [0, 0], sizes = [2, 128], strides = [1, 1]} : vector<2x512xf32> to vector<2x128xf32>
    %cst_41 = arith.constant 5.000000e-01 : f32
    %108 = vector.broadcast %cst_41 : f32 to vector<2x128xf32>
    %109 = arith.mulf %108, %107 : vector<2x128xf32>
    %cst_42 = arith.constant 5.000000e-01 : f32
    %110 = vector.broadcast %cst_42 : f32 to vector<2x128xf32>
    %111 = arith.addf %109, %110 : vector<2x128xf32>
    %112 = vector.extract_strided_slice %106 {offsets = [0, 128], sizes = [2, 128], strides = [1, 1]} : vector<2x512xf32> to vector<2x128xf32>
    %cst_43 = arith.constant 5.000000e-01 : f32
    %113 = vector.broadcast %cst_43 : f32 to vector<2x128xf32>
    %114 = arith.mulf %113, %112 : vector<2x128xf32>
    %cst_44 = arith.constant 5.000000e-01 : f32
    %115 = vector.broadcast %cst_44 : f32 to vector<2x128xf32>
    %116 = arith.addf %114, %115 : vector<2x128xf32>
    %117 = vector.extract_strided_slice %106 {offsets = [0, 256], sizes = [2, 128], strides = [1, 1]} : vector<2x512xf32> to vector<2x128xf32>
    %118 = vector.extract_strided_slice %106 {offsets = [0, 384], sizes = [2, 128], strides = [1, 1]} : vector<2x512xf32> to vector<2x128xf32>
    %cst_45 = arith.constant 5.000000e-01 : f32
    %119 = vector.broadcast %cst_45 : f32 to vector<2x128xf32>
    %120 = arith.mulf %119, %118 : vector<2x128xf32>
    %cst_46 = arith.constant 5.000000e-01 : f32
    %121 = vector.broadcast %cst_46 : f32 to vector<2x128xf32>
    %122 = arith.addf %120, %121 : vector<2x128xf32>
    %123 = arith.mulf %116, %99 : vector<2x128xf32>
    %124 = arith.mulf %111, %117 : vector<2x128xf32>
    %125 = arith.addf %123, %124 : vector<2x128xf32>
    %126 = math.tanh %125 : vector<2x128xf32>
    %127 = arith.mulf %122, %126 : vector<2x128xf32>
    %c6 = arith.constant 6 : index
    %c0_47 = arith.constant 0 : index
    %128 = vector.load %arg9[%c6, %c0_47] : memref<22x128xf32, #tpu.memory_space<vmem>>, vector<2x128xf32>
    tpu.vector_store %arg9[%c6, %c0_47], %127 {strides = array<i32>} : memref<22x128xf32, #tpu.memory_space<vmem>>, vector<2x128xf32>,
    %129 = vector.extract_strided_slice %8 {offsets = [10, 0], sizes = [2, 512], strides = [1, 1]} : vector<16x512xf32> to vector<2x512xf32>
    %cst_48 = arith.constant dense<0.000000e+00> : vector<2x512xf32>
    %130 = tpu.matmul %127, %0, %cst_48 {dimension_numbers = #tpu.dot_dimension_numbers<[1], [0], [0], [1], [0, 0, 1, 1], [], []>} : vector<2x128xf32>, vector<128x512xf32>, vector<2x512xf32> -> vector<2x512xf32>
    %131 = arith.addf %129, %130 : vector<2x512xf32>
    %132 = math.tanh %131 : vector<2x512xf32>
    %133 = vector.extract_strided_slice %132 {offsets = [0, 0], sizes = [2, 128], strides = [1, 1]} : vector<2x512xf32> to vector<2x128xf32>
    %cst_49 = arith.constant 5.000000e-01 : f32
    %134 = vector.broadcast %cst_49 : f32 to vector<2x128xf32>
    %135 = arith.mulf %134, %133 : vector<2x128xf32>
    %cst_50 = arith.constant 5.000000e-01 : f32
    %136 = vector.broadcast %cst_50 : f32 to vector<2x128xf32>
    %137 = arith.addf %135, %136 : vector<2x128xf32>
    %138 = vector.extract_strided_slice %132 {offsets = [0, 128], sizes = [2, 128], strides = [1, 1]} : vector<2x512xf32> to vector<2x128xf32>
    %cst_51 = arith.constant 5.000000e-01 : f32
    %139 = vector.broadcast %cst_51 : f32 to vector<2x128xf32>
    %140 = arith.mulf %139, %138 : vector<2x128xf32>
    %cst_52 = arith.constant 5.000000e-01 : f32
    %141 = vector.broadcast %cst_52 : f32 to vector<2x128xf32>
    %142 = arith.addf %140, %141 : vector<2x128xf32>
    %143 = vector.extract_strided_slice %132 {offsets = [0, 256], sizes = [2, 128], strides = [1, 1]} : vector<2x512xf32> to vector<2x128xf32>
    %144 = vector.extract_strided_slice %132 {offsets = [0, 384], sizes = [2, 128], strides = [1, 1]} : vector<2x512xf32> to vector<2x128xf32>
    %cst_53 = arith.constant 5.000000e-01 : f32
    %145 = vector.broadcast %cst_53 : f32 to vector<2x128xf32>
    %146 = arith.mulf %145, %144 : vector<2x128xf32>
    %cst_54 = arith.constant 5.000000e-01 : f32
    %147 = vector.broadcast %cst_54 : f32 to vector<2x128xf32>
    %148 = arith.addf %146, %147 : vector<2x128xf32>
    %149 = arith.mulf %142, %125 : vector<2x128xf32>
    %150 = arith.mulf %137, %143 : vector<2x128xf32>
    %151 = arith.addf %149, %150 : vector<2x128xf32>
    %152 = math.tanh %151 : vector<2x128xf32>
    %153 = arith.mulf %148, %152 : vector<2x128xf32>
    %c8 = arith.constant 8 : index
    %c0_55 = arith.constant 0 : index
    %154 = vector.load %arg9[%c8, %c0_55] : memref<22x128xf32, #tpu.memory_space<vmem>>, vector<2x128xf32>
    tpu.vector_store %arg9[%c8, %c0_55], %153 {strides = array<i32>} : memref<22x128xf32, #tpu.memory_space<vmem>>, vector<2x128xf32>,
    %155 = vector.extract_strided_slice %8 {offsets = [12, 0], sizes = [2, 512], strides = [1, 1]} : vector<16x512xf32> to vector<2x512xf32>
    %cst_56 = arith.constant dense<0.000000e+00> : vector<2x512xf32>
    %156 = tpu.matmul %153, %0, %cst_56 {dimension_numbers = #tpu.dot_dimension_numbers<[1], [0], [0], [1], [0, 0, 1, 1], [], []>} : vector<2x128xf32>, vector<128x512xf32>, vector<2x512xf32> -> vector<2x512xf32>
    %157 = arith.addf %155, %156 : vector<2x512xf32>
    %158 = math.tanh %157 : vector<2x512xf32>
    %159 = vector.extract_strided_slice %158 {offsets = [0, 0], sizes = [2, 128], strides = [1, 1]} : vector<2x512xf32> to vector<2x128xf32>
    %cst_57 = arith.constant 5.000000e-01 : f32
    %160 = vector.broadcast %cst_57 : f32 to vector<2x128xf32>
    %161 = arith.mulf %160, %159 : vector<2x128xf32>
    %cst_58 = arith.constant 5.000000e-01 : f32
    %162 = vector.broadcast %cst_58 : f32 to vector<2x128xf32>
    %163 = arith.addf %161, %162 : vector<2x128xf32>
    %164 = vector.extract_strided_slice %158 {offsets = [0, 128], sizes = [2, 128], strides = [1, 1]} : vector<2x512xf32> to vector<2x128xf32>
    %cst_59 = arith.constant 5.000000e-01 : f32
    %165 = vector.broadcast %cst_59 : f32 to vector<2x128xf32>
    %166 = arith.mulf %165, %164 : vector<2x128xf32>
    %cst_60 = arith.constant 5.000000e-01 : f32
    %167 = vector.broadcast %cst_60 : f32 to vector<2x128xf32>
    %168 = arith.addf %166, %167 : vector<2x128xf32>
    %169 = vector.extract_strided_slice %158 {offsets = [0, 256], sizes = [2, 128], strides = [1, 1]} : vector<2x512xf32> to vector<2x128xf32>
    %170 = vector.extract_strided_slice %158 {offsets = [0, 384], sizes = [2, 128], strides = [1, 1]} : vector<2x512xf32> to vector<2x128xf32>
    %cst_61 = arith.constant 5.000000e-01 : f32
    %171 = vector.broadcast %cst_61 : f32 to vector<2x128xf32>
    %172 = arith.mulf %171, %170 : vector<2x128xf32>
    %cst_62 = arith.constant 5.000000e-01 : f32
    %173 = vector.broadcast %cst_62 : f32 to vector<2x128xf32>
    %174 = arith.addf %172, %173 : vector<2x128xf32>
    %175 = arith.mulf %168, %151 : vector<2x128xf32>
    %176 = arith.mulf %163, %169 : vector<2x128xf32>
    %177 = arith.addf %175, %176 : vector<2x128xf32>
    %178 = math.tanh %177 : vector<2x128xf32>
    %179 = arith.mulf %174, %178 : vector<2x128xf32>
    %c10 = arith.constant 10 : index
    %c0_63 = arith.constant 0 : index
    %180 = vector.load %arg9[%c10, %c0_63] : memref<22x128xf32, #tpu.memory_space<vmem>>, vector<2x128xf32>
    tpu.vector_store %arg9[%c10, %c0_63], %179 {strides = array<i32>} : memref<22x128xf32, #tpu.memory_space<vmem>>, vector<2x128xf32>,
    %181 = vector.extract_strided_slice %8 {offsets = [14, 0], sizes = [2, 512], strides = [1, 1]} : vector<16x512xf32> to vector<2x512xf32>
    %cst_64 = arith.constant dense<0.000000e+00> : vector<2x512xf32>
    %182 = tpu.matmul %179, %0, %cst_64 {dimension_numbers = #tpu.dot_dimension_numbers<[1], [0], [0], [1], [0, 0, 1, 1], [], []>} : vector<2x128xf32>, vector<128x512xf32>, vector<2x512xf32> -> vector<2x512xf32>
    %183 = arith.addf %181, %182 : vector<2x512xf32>
    %184 = math.tanh %183 : vector<2x512xf32>
    %185 = vector.extract_strided_slice %184 {offsets = [0, 0], sizes = [2, 128], strides = [1, 1]} : vector<2x512xf32> to vector<2x128xf32>
    %cst_65 = arith.constant 5.000000e-01 : f32
    %186 = vector.broadcast %cst_65 : f32 to vector<2x128xf32>
    %187 = arith.mulf %186, %185 : vector<2x128xf32>
    %cst_66 = arith.constant 5.000000e-01 : f32
    %188 = vector.broadcast %cst_66 : f32 to vector<2x128xf32>
    %189 = arith.addf %187, %188 : vector<2x128xf32>
    %190 = vector.extract_strided_slice %184 {offsets = [0, 128], sizes = [2, 128], strides = [1, 1]} : vector<2x512xf32> to vector<2x128xf32>
    %cst_67 = arith.constant 5.000000e-01 : f32
    %191 = vector.broadcast %cst_67 : f32 to vector<2x128xf32>
    %192 = arith.mulf %191, %190 : vector<2x128xf32>
    %cst_68 = arith.constant 5.000000e-01 : f32
    %193 = vector.broadcast %cst_68 : f32 to vector<2x128xf32>
    %194 = arith.addf %192, %193 : vector<2x128xf32>
    %195 = vector.extract_strided_slice %184 {offsets = [0, 256], sizes = [2, 128], strides = [1, 1]} : vector<2x512xf32> to vector<2x128xf32>
    %196 = vector.extract_strided_slice %184 {offsets = [0, 384], sizes = [2, 128], strides = [1, 1]} : vector<2x512xf32> to vector<2x128xf32>
    %cst_69 = arith.constant 5.000000e-01 : f32
    %197 = vector.broadcast %cst_69 : f32 to vector<2x128xf32>
    %198 = arith.mulf %197, %196 : vector<2x128xf32>
    %cst_70 = arith.constant 5.000000e-01 : f32
    %199 = vector.broadcast %cst_70 : f32 to vector<2x128xf32>
    %200 = arith.addf %198, %199 : vector<2x128xf32>
    %201 = arith.mulf %194, %177 : vector<2x128xf32>
    %202 = arith.mulf %189, %195 : vector<2x128xf32>
    %203 = arith.addf %201, %202 : vector<2x128xf32>
    %204 = math.tanh %203 : vector<2x128xf32>
    %205 = arith.mulf %200, %204 : vector<2x128xf32>
    %c12 = arith.constant 12 : index
    %c0_71 = arith.constant 0 : index
    %206 = vector.load %arg9[%c12, %c0_71] : memref<22x128xf32, #tpu.memory_space<vmem>>, vector<2x128xf32>
    tpu.vector_store %arg9[%c12, %c0_71], %205 {strides = array<i32>} : memref<22x128xf32, #tpu.memory_space<vmem>>, vector<2x128xf32>,
    %cst_72 = arith.constant dense<0.000000e+00> : vector<2x512xf32>
    %207 = tpu.matmul %205, %1, %cst_72 {dimension_numbers = #tpu.dot_dimension_numbers<[1], [0], [0], [1], [0, 0, 1, 1], [], []>} : vector<2x128xf32>, vector<128x512xf32>, vector<2x512xf32> -> vector<2x512xf32>
    %208 = vector.broadcast %2 : vector<1x512xf32> to vector<2x512xf32>
    %209 = arith.addf %207, %208 : vector<2x512xf32>
    %210 = math.tanh %209 : vector<2x512xf32>
    %211 = vector.extract_strided_slice %210 {offsets = [0, 0], sizes = [2, 128], strides = [1, 1]} : vector<2x512xf32> to vector<2x128xf32>
    %cst_73 = arith.constant 5.000000e-01 : f32
    %212 = vector.broadcast %cst_73 : f32 to vector<2x128xf32>
    %213 = arith.mulf %212, %211 : vector<2x128xf32>
    %cst_74 = arith.constant 5.000000e-01 : f32
    %214 = vector.broadcast %cst_74 : f32 to vector<2x128xf32>
    %215 = arith.addf %213, %214 : vector<2x128xf32>
    %216 = vector.extract_strided_slice %210 {offsets = [0, 256], sizes = [2, 128], strides = [1, 1]} : vector<2x512xf32> to vector<2x128xf32>
    %217 = vector.extract_strided_slice %210 {offsets = [0, 384], sizes = [2, 128], strides = [1, 1]} : vector<2x512xf32> to vector<2x128xf32>
    %cst_75 = arith.constant 5.000000e-01 : f32
    %218 = vector.broadcast %cst_75 : f32 to vector<2x128xf32>
    %219 = arith.mulf %218, %217 : vector<2x128xf32>
    %cst_76 = arith.constant 5.000000e-01 : f32
    %220 = vector.broadcast %cst_76 : f32 to vector<2x128xf32>
    %221 = arith.addf %219, %220 : vector<2x128xf32>
    %222 = arith.mulf %215, %216 : vector<2x128xf32>
    %223 = math.tanh %222 : vector<2x128xf32>
    %224 = arith.mulf %221, %223 : vector<2x128xf32>
    %c14 = arith.constant 14 : index
    %c0_77 = arith.constant 0 : index
    %225 = vector.load %arg9[%c14, %c0_77] : memref<22x128xf32, #tpu.memory_space<vmem>>, vector<2x128xf32>
    tpu.vector_store %arg9[%c14, %c0_77], %224 {strides = array<i32>} : memref<22x128xf32, #tpu.memory_space<vmem>>, vector<2x128xf32>,
    %cst_78 = arith.constant dense<0.000000e+00> : vector<2x512xf32>
    %226 = tpu.matmul %224, %1, %cst_78 {dimension_numbers = #tpu.dot_dimension_numbers<[1], [0], [0], [1], [0, 0, 1, 1], [], []>} : vector<2x128xf32>, vector<128x512xf32>, vector<2x512xf32> -> vector<2x512xf32>
    %227 = vector.broadcast %2 : vector<1x512xf32> to vector<2x512xf32>
    %228 = arith.addf %226, %227 : vector<2x512xf32>
    %229 = math.tanh %228 : vector<2x512xf32>
    %230 = vector.extract_strided_slice %229 {offsets = [0, 0], sizes = [2, 128], strides = [1, 1]} : vector<2x512xf32> to vector<2x128xf32>
    %cst_79 = arith.constant 5.000000e-01 : f32
    %231 = vector.broadcast %cst_79 : f32 to vector<2x128xf32>
    %232 = arith.mulf %231, %230 : vector<2x128xf32>
    %cst_80 = arith.constant 5.000000e-01 : f32
    %233 = vector.broadcast %cst_80 : f32 to vector<2x128xf32>
    %234 = arith.addf %232, %233 : vector<2x128xf32>
    %235 = vector.extract_strided_slice %229 {offsets = [0, 256], sizes = [2, 128], strides = [1, 1]} : vector<2x512xf32> to vector<2x128xf32>
    %236 = vector.extract_strided_slice %229 {offsets = [0, 384], sizes = [2, 128], strides = [1, 1]} : vector<2x512xf32> to vector<2x128xf32>
    %cst_81 = arith.constant 5.000000e-01 : f32
    %237 = vector.broadcast %cst_81 : f32 to vector<2x128xf32>
    %238 = arith.mulf %237, %236 : vector<2x128xf32>
    %cst_82 = arith.constant 5.000000e-01 : f32
    %239 = vector.broadcast %cst_82 : f32 to vector<2x128xf32>
    %240 = arith.addf %238, %239 : vector<2x128xf32>
    %241 = arith.mulf %234, %235 : vector<2x128xf32>
    %242 = math.tanh %241 : vector<2x128xf32>
    %243 = arith.mulf %240, %242 : vector<2x128xf32>
    %c16 = arith.constant 16 : index
    %c0_83 = arith.constant 0 : index
    %244 = vector.load %arg9[%c16, %c0_83] : memref<22x128xf32, #tpu.memory_space<vmem>>, vector<2x128xf32>
    tpu.vector_store %arg9[%c16, %c0_83], %243 {strides = array<i32>} : memref<22x128xf32, #tpu.memory_space<vmem>>, vector<2x128xf32>,
    %cst_84 = arith.constant dense<0.000000e+00> : vector<2x512xf32>
    %245 = tpu.matmul %243, %1, %cst_84 {dimension_numbers = #tpu.dot_dimension_numbers<[1], [0], [0], [1], [0, 0, 1, 1], [], []>} : vector<2x128xf32>, vector<128x512xf32>, vector<2x512xf32> -> vector<2x512xf32>
    %246 = vector.broadcast %2 : vector<1x512xf32> to vector<2x512xf32>
    %247 = arith.addf %245, %246 : vector<2x512xf32>
    %248 = math.tanh %247 : vector<2x512xf32>
    %249 = vector.extract_strided_slice %248 {offsets = [0, 0], sizes = [2, 128], strides = [1, 1]} : vector<2x512xf32> to vector<2x128xf32>
    %cst_85 = arith.constant 5.000000e-01 : f32
    %250 = vector.broadcast %cst_85 : f32 to vector<2x128xf32>
    %251 = arith.mulf %250, %249 : vector<2x128xf32>
    %cst_86 = arith.constant 5.000000e-01 : f32
    %252 = vector.broadcast %cst_86 : f32 to vector<2x128xf32>
    %253 = arith.addf %251, %252 : vector<2x128xf32>
    %254 = vector.extract_strided_slice %248 {offsets = [0, 256], sizes = [2, 128], strides = [1, 1]} : vector<2x512xf32> to vector<2x128xf32>
    %255 = vector.extract_strided_slice %248 {offsets = [0, 384], sizes = [2, 128], strides = [1, 1]} : vector<2x512xf32> to vector<2x128xf32>
    %cst_87 = arith.constant 5.000000e-01 : f32
    %256 = vector.broadcast %cst_87 : f32 to vector<2x128xf32>
    %257 = arith.mulf %256, %255 : vector<2x128xf32>
    %cst_88 = arith.constant 5.000000e-01 : f32
    %258 = vector.broadcast %cst_88 : f32 to vector<2x128xf32>
    %259 = arith.addf %257, %258 : vector<2x128xf32>
    %260 = arith.mulf %253, %254 : vector<2x128xf32>
    %261 = math.tanh %260 : vector<2x128xf32>
    %262 = arith.mulf %259, %261 : vector<2x128xf32>
    %c18 = arith.constant 18 : index
    %c0_89 = arith.constant 0 : index
    %263 = vector.load %arg9[%c18, %c0_89] : memref<22x128xf32, #tpu.memory_space<vmem>>, vector<2x128xf32>
    tpu.vector_store %arg9[%c18, %c0_89], %262 {strides = array<i32>} : memref<22x128xf32, #tpu.memory_space<vmem>>, vector<2x128xf32>,
    %cst_90 = arith.constant dense<0.000000e+00> : vector<2x512xf32>
    %264 = tpu.matmul %262, %1, %cst_90 {dimension_numbers = #tpu.dot_dimension_numbers<[1], [0], [0], [1], [0, 0, 1, 1], [], []>} : vector<2x128xf32>, vector<128x512xf32>, vector<2x512xf32> -> vector<2x512xf32>
    %265 = vector.broadcast %2 : vector<1x512xf32> to vector<2x512xf32>
    %266 = arith.addf %264, %265 : vector<2x512xf32>
    %267 = math.tanh %266 : vector<2x512xf32>
    %268 = vector.extract_strided_slice %267 {offsets = [0, 0], sizes = [2, 128], strides = [1, 1]} : vector<2x512xf32> to vector<2x128xf32>
    %cst_91 = arith.constant 5.000000e-01 : f32
    %269 = vector.broadcast %cst_91 : f32 to vector<2x128xf32>
    %270 = arith.mulf %269, %268 : vector<2x128xf32>
    %cst_92 = arith.constant 5.000000e-01 : f32
    %271 = vector.broadcast %cst_92 : f32 to vector<2x128xf32>
    %272 = arith.addf %270, %271 : vector<2x128xf32>
    %273 = vector.extract_strided_slice %267 {offsets = [0, 256], sizes = [2, 128], strides = [1, 1]} : vector<2x512xf32> to vector<2x128xf32>
    %274 = vector.extract_strided_slice %267 {offsets = [0, 384], sizes = [2, 128], strides = [1, 1]} : vector<2x512xf32> to vector<2x128xf32>
    %cst_93 = arith.constant 5.000000e-01 : f32
    %275 = vector.broadcast %cst_93 : f32 to vector<2x128xf32>
    %276 = arith.mulf %275, %274 : vector<2x128xf32>
    %cst_94 = arith.constant 5.000000e-01 : f32
    %277 = vector.broadcast %cst_94 : f32 to vector<2x128xf32>
    %278 = arith.addf %276, %277 : vector<2x128xf32>
    %279 = arith.mulf %272, %273 : vector<2x128xf32>
    %280 = math.tanh %279 : vector<2x128xf32>
    %281 = arith.mulf %278, %280 : vector<2x128xf32>
    %c20 = arith.constant 20 : index
    %c0_95 = arith.constant 0 : index
    %282 = vector.load %arg9[%c20, %c0_95] : memref<22x128xf32, #tpu.memory_space<vmem>>, vector<2x128xf32>
    tpu.vector_store %arg9[%c20, %c0_95], %281 {strides = array<i32>} : memref<22x128xf32, #tpu.memory_space<vmem>>, vector<2x128xf32>,
    %c0_96 = arith.constant 0 : index
    %c0_97 = arith.constant 0 : index
    %283 = vector.load %arg9[%c0_96, %c0_97] : memref<22x128xf32, #tpu.memory_space<vmem>>, vector<22x128xf32>
    %c0_98 = arith.constant 0 : index
    %c0_99 = arith.constant 0 : index
    %284 = vector.load %arg6[%c0_98, %c0_99] : memref<128x128xf32, #tpu.memory_space<vmem>>, vector<128x128xf32>
    %cst_100 = arith.constant dense<0.000000e+00> : vector<22x128xf32>
    %285 = tpu.matmul %283, %284, %cst_100 {dimension_numbers = #tpu.dot_dimension_numbers<[1], [0], [0], [1], [0, 0, 1, 1], [], []>} : vector<22x128xf32>, vector<128x128xf32>, vector<22x128xf32> -> vector<22x128xf32>
    %c0_101 = arith.constant 0 : index
    %c0_102 = arith.constant 0 : index
    %286 = vector.load %arg7[%c0_101, %c0_102] : memref<1x128xf32, #tpu.memory_space<vmem>>, vector<1x128xf32>
    %287 = vector.broadcast %286 : vector<1x128xf32> to vector<22x128xf32>
    %288 = arith.addf %285, %287 : vector<22x128xf32>
    %c0_103 = arith.constant 0 : index
    %c0_104 = arith.constant 0 : index
    %289 = vector.load %arg8[%c0_103, %c0_104] : memref<22x128xf32, #tpu.memory_space<vmem>>, vector<22x128xf32>
    tpu.vector_store %arg8[%c0_103, %c0_104], %288 {strides = array<i32>} : memref<22x128xf32, #tpu.memory_space<vmem>>, vector<22x128xf32>,
    return
  }
}

</mosaic_0001>

<llo_original>
// kernel: model_forward.1
$region0: #{model_forward.1}
  #allocation0 [shape = 'u32[]', space=smem, size = 0x4, offset = 0x4, fixed_abs, tag = 'smem constant byte address 0x4 - core index']
  #allocation1 [shape = 'u32[144,128]{1,0:T(1,128)}', space=vmem, size = 0x12000, scoped, tag = 'internal scratch']
  #allocation2 [shape = 'f32[22,128]{1,0:T(8,128)}', space=vmem, size = 0x3000, scoped, tag = 'scratch operand']
  %s0 = inlined_call_operand.vmem [shape: f32[16,7], index: 0, kind: input, shape index: {}]
  %s1 = inlined_call_operand.vmem [shape: f32[7,512], index: 1, kind: input, shape index: {}]
  %s2 = inlined_call_operand.vmem [shape: f32[1,512], index: 2, kind: input, shape index: {}]
  %s3 = inlined_call_operand.hbm [shape: f32[128,512], index: 3, kind: input, shape index: {}]
  %s4 = inlined_call_operand.hbm [shape: f32[128,512], index: 4, kind: input, shape index: {}]
  %s5 = inlined_call_operand.vmem [shape: f32[1,512], index: 5, kind: input, shape index: {}]
  %s6 = inlined_call_operand.hbm [shape: f32[128,128], index: 6, kind: input, shape index: {}]
  %s7 = inlined_call_operand.vmem [shape: f32[1,128], index: 7, kind: input, shape index: {}]
  %s8 = inlined_call_operand.vmem [shape: f32[22,128], index: 8, kind: output, shape index: {}]
  %s9 = sld [smem:[#allocation0]]
  $region54: #{model_forward.1} parent=0
    _
  %s11 = ssub.s32 1, %s9
  %s12 = scalar_select 0, %s11, %s9
  $region1: #{model_forward.1} parent=0
    #allocation3 [shape = 'u8[262144]{0}', space=vmem, size = 0x40000, scoped, tag = 'input window, operand 3, single buffered']
    #allocation4 [shape = 's32[1]{0}', space=sflag, size = 0x4, scoped, tag = 'scoped memory for model_forward.1']
    #allocation5 [shape = 'u8[262144]{0}', space=vmem, size = 0x40000, scoped, tag = 'input window, operand 4, single buffered']
    #allocation6 [shape = 's32[1]{0}', space=sflag, size = 0x4, scoped, tag = 'scoped memory for model_forward.1']
    #allocation7 [shape = 'u8[65536]{0}', space=vmem, size = 0x10000, scoped, tag = 'input window, operand 6, single buffered']
    %13 = vsyncpa [#allocation4], 0
    %14 = vsyncpa [#allocation6], 0
    // Predicated region
    $region2: #{model_forward.1} parent=1 // pred_check
      _
    $region3: #{model_forward.1} parent=1 // pred_check_branch
      %16 = sbr.rel (0) target = $region5
    $region4: #{model_forward.1} parent=1 // pred_region
      _
    $region5: #{model_forward.1} parent=1 // pred_fallthru
      _
    // Predicated region
    $region6: #{model_forward.1} parent=1 // pred_check
      _
    $region7: #{model_forward.1} parent=1 // pred_check_branch
      %18 = sbr.rel (0) target = $region9
    $region8: #{model_forward.1} parent=1 // pred_region
      _
    $region9: #{model_forward.1} parent=1 // pred_fallthru
      _
    // Predicated region
    $region10: #{model_forward.1} parent=1 // pred_check
      _
    $region11: #{model_forward.1} parent=1 // pred_check_branch
      %20 = sbr.rel (0) target = $region13
    $region12: #{model_forward.1} parent=1 // pred_region
      _
    $region13: #{model_forward.1} parent=1 // pred_fallthru
      _
    // Predicated region
    $region14: #{model_forward.1} parent=1 // pred_check
      _
    $region15: #{model_forward.1} parent=1 // pred_check_branch
      %22 = sbr.rel (0) target = $region17
    $region16: #{model_forward.1} parent=1 // pred_region
      %s24 = ssub.s32 8192, 8192
      %25 = vsyncadd [#allocation4], %s24
      %s26 = sshll.u32 [#allocation3], 4
      %s27 = int_to_ptr.vmem [resolvable:$true] %s26
      %32 = dma.hbm_to_vmem [thread:$0]  %s3, 8192, %s27, [#allocation4], 512, 512, 32
    $region17: #{model_forward.1} parent=1 // pred_fallthru
      _
    // Predicated region
    $region18: #{model_forward.1} parent=1 // pred_check
      _
    $region19: #{model_forward.1} parent=1 // pred_check_branch
      %34 = sbr.rel (0) target = $region21
    $region20: #{model_forward.1} parent=1 // pred_region
      %s36 = ssub.s32 8192, 8192
      %37 = vsyncadd [#allocation6], %s36
      %s38 = sshll.u32 [#allocation5], 4
      %s39 = int_to_ptr.vmem [resolvable:$true] %s38
      %44 = dma.hbm_to_vmem [thread:$0]  %s4, 8192, %s39, [#allocation6], 512, 512, 32
    $region21: #{model_forward.1} parent=1 // pred_fallthru
      _
    // Predicated region
    $region22: #{model_forward.1} parent=1 // pred_check
      _
    $region23: #{model_forward.1} parent=1 // pred_check_branch
      %46 = sbr.rel (0) target = $region25
    $region24: #{model_forward.1} parent=1 // pred_region
      _
    $region25: #{model_forward.1} parent=1 // pred_fallthru
      _
    // Predicated region
    $region26: #{model_forward.1} parent=1 // pred_check
      _
    $region27: #{model_forward.1} parent=1 // pred_check_branch
      %48 = sbr.rel (0) target = $region29
    $region28: #{model_forward.1} parent=1 // pred_region
      %s50 = ssub.s32 2048, 2048
      %51 = vsyncadd [#allocation6], %s50
      %s52 = sshll.u32 [#allocation7], 4
      %s53 = int_to_ptr.vmem [resolvable:$true] %s52
      %58 = dma.hbm_to_vmem [thread:$0]  %s6, 2048, %s53, [#allocation6], 128, 128, 8
    $region29: #{model_forward.1} parent=1 // pred_fallthru
      _
    // Predicated region
    $region30: #{model_forward.1} parent=1 // pred_check
      _
    $region31: #{model_forward.1} parent=1 // pred_check_branch
      %60 = sbr.rel (0) target = $region33
    $region32: #{model_forward.1} parent=1 // pred_region
      _
    $region33: #{model_forward.1} parent=1 // pred_fallthru
      _
    // Predicated region
    $region34: #{model_forward.1} parent=1 // pred_check
      _
    $region35: #{model_forward.1} parent=1 // pred_check_branch
      %62 = sbr.rel (0) target = $region37
    $region36: #{model_forward.1} parent=1 // pred_region
      %63 = dma.done [#allocation4], 8192
    $region37: #{model_forward.1} parent=1 // pred_fallthru
      _
    // Predicated region
    $region38: #{model_forward.1} parent=1 // pred_check
      _
    $region39: #{model_forward.1} parent=1 // pred_check_branch
      %65 = sbr.rel (0) target = $region41
    $region40: #{model_forward.1} parent=1 // pred_region
      %66 = dma.done [#allocation6], 8192
    $region41: #{model_forward.1} parent=1 // pred_fallthru
      _
    // Predicated region
    $region42: #{model_forward.1} parent=1 // pred_check
      _
    $region43: #{model_forward.1} parent=1 // pred_check_branch
      %68 = sbr.rel (0) target = $region45
    $region44: #{model_forward.1} parent=1 // pred_region
      %69 = dma.done [#allocation6], 2048
    $region45: #{model_forward.1} parent=1 // pred_fallthru
      _
    %v70 = vld [vmem:[#allocation3] sm:$0xff]
    %v71 = vld [vmem:[#allocation3 + $0x8] sm:$0xff]
    %v72 = vld [vmem:[#allocation3 + $0x10] sm:$0xff]
    %v73 = vld [vmem:[#allocation3 + $0x18] sm:$0xff]
    %v74 = vld [vmem:[#allocation3 + $0x20] sm:$0xff]
    %v75 = vld [vmem:[#allocation3 + $0x28] sm:$0xff]
    %v76 = vld [vmem:[#allocation3 + $0x30] sm:$0xff]
    %v77 = vld [vmem:[#allocation3 + $0x38] sm:$0xff]
    %v78 = vld [vmem:[#allocation3 + $0x40] sm:$0xff]
    %v79 = vld [vmem:[#allocation3 + $0x48] sm:$0xff]
    %v80 = vld [vmem:[#allocation3 + $0x50] sm:$0xff]
    %v81 = vld [vmem:[#allocation3 + $0x58] sm:$0xff]
    %v82 = vld [vmem:[#allocation3 + $0x60] sm:$0xff]
    %v83 = vld [vmem:[#allocation3 + $0x68] sm:$0xff]
    %v84 = vld [vmem:[#allocation3 + $0x70] sm:$0xff]
    %v85 = vld [vmem:[#allocation3 + $0x78] sm:$0xff]
    %v86 = vld [vmem:[#allocation3 + $0x80] sm:$0xff]
    %v87 = vld [vmem:[#allocation3 + $0x88] sm:$0xff]
    %v88 = vld [vmem:[#allocation3 + $0x90] sm:$0xff]
    %v89 = vld [vmem:[#allocation3 + $0x98] sm:$0xff]
    %v90 = vld [vmem:[#allocation3 + $0xa0] sm:$0xff]
    %v91 = vld [vmem:[#allocation3 + $0xa8] sm:$0xff]
    %v92 = vld [vmem:[#allocation3 + $0xb0] sm:$0xff]
    %v93 = vld [vmem:[#allocation3 + $0xb8] sm:$0xff]
    %v94 = vld [vmem:[#allocation3 + $0xc0] sm:$0xff]
    %v95 = vld [vmem:[#allocation3 + $0xc8] sm:$0xff]
    %v96 = vld [vmem:[#allocation3 + $0xd0] sm:$0xff]
    %v97 = vld [vmem:[#allocation3 + $0xd8] sm:$0xff]
    %v98 = vld [vmem:[#allocation3 + $0xe0] sm:$0xff]
    %v99 = vld [vmem:[#allocation3 + $0xe8] sm:$0xff]
    %v100 = vld [vmem:[#allocation3 + $0xf0] sm:$0xff]
    %v101 = vld [vmem:[#allocation3 + $0xf8] sm:$0xff]
    %v102 = vld [vmem:[#allocation3 + $0x100] sm:$0xff]
    %v103 = vld [vmem:[#allocation3 + $0x108] sm:$0xff]
    %v104 = vld [vmem:[#allocation3 + $0x110] sm:$0xff]
    %v105 = vld [vmem:[#allocation3 + $0x118] sm:$0xff]
    %v106 = vld [vmem:[#allocation3 + $0x120] sm:$0xff]
    %v107 = vld [vmem:[#allocation3 + $0x128] sm:$0xff]
    %v108 = vld [vmem:[#allocation3 + $0x130] sm:$0xff]
    %v109 = vld [vmem:[#allocation3 + $0x138] sm:$0xff]
    %v110 = vld [vmem:[#allocation3 + $0x140] sm:$0xff]
    %v111 = vld [vmem:[#allocation3 + $0x148] sm:$0xff]
    %v112 = vld [vmem:[#allocation3 + $0x150] sm:$0xff]
    %v113 = vld [vmem:[#allocation3 + $0x158] sm:$0xff]
    %v114 = vld [vmem:[#allocation3 + $0x160] sm:$0xff]
    %v115 = vld [vmem:[#allocation3 + $0x168] sm:$0xff]
    %v116 = vld [vmem:[#allocation3 + $0x170] sm:$0xff]
    %v117 = vld [vmem:[#allocation3 + $0x178] sm:$0xff]
    %v118 = vld [vmem:[#allocation3 + $0x180] sm:$0xff]
    %v119 = vld [vmem:[#allocation3 + $0x188] sm:$0xff]
    %v120 = vld [vmem:[#allocation3 + $0x190] sm:$0xff]
    %v121 = vld [vmem:[#allocation3 + $0x198] sm:$0xff]
    %v122 = vld [vmem:[#allocation3 + $0x1a0] sm:$0xff]
    %v123 = vld [vmem:[#allocation3 + $0x1a8] sm:$0xff]
    %v124 = vld [vmem:[#allocation3 + $0x1b0] sm:$0xff]
    %v125 = vld [vmem:[#allocation3 + $0x1b8] sm:$0xff]
    %v126 = vld [vmem:[#allocation3 + $0x1c0] sm:$0xff]
    %v127 = vld [vmem:[#allocation3 + $0x1c8] sm:$0xff]
    %v128 = vld [vmem:[#allocation3 + $0x1d0] sm:$0xff]
    %v129 = vld [vmem:[#allocation3 + $0x1d8] sm:$0xff]
    %v130 = vld [vmem:[#allocation3 + $0x1e0] sm:$0xff]
    %v131 = vld [vmem:[#allocation3 + $0x1e8] sm:$0xff]
    %v132 = vld [vmem:[#allocation3 + $0x1f0] sm:$0xff]
    %v133 = vld [vmem:[#allocation3 + $0x1f8] sm:$0xff]
    %v134 = vld [vmem:[#allocation5] sm:$0xff]
    %v135 = vld [vmem:[#allocation5 + $0x8] sm:$0xff]
    %v136 = vld [vmem:[#allocation5 + $0x10] sm:$0xff]
    %v137 = vld [vmem:[#allocation5 + $0x18] sm:$0xff]
    %v138 = vld [vmem:[#allocation5 + $0x20] sm:$0xff]
    %v139 = vld [vmem:[#allocation5 + $0x28] sm:$0xff]
    %v140 = vld [vmem:[#allocation5 + $0x30] sm:$0xff]
    %v141 = vld [vmem:[#allocation5 + $0x38] sm:$0xff]
    %v142 = vld [vmem:[#allocation5 + $0x40] sm:$0xff]
    %v143 = vld [vmem:[#allocation5 + $0x48] sm:$0xff]
    %v144 = vld [vmem:[#allocation5 + $0x50] sm:$0xff]
    %v145 = vld [vmem:[#allocation5 + $0x58] sm:$0xff]
    %v146 = vld [vmem:[#allocation5 + $0x60] sm:$0xff]
    %v147 = vld [vmem:[#allocation5 + $0x68] sm:$0xff]
    %v148 = vld [vmem:[#allocation5 + $0x70] sm:$0xff]
    %v149 = vld [vmem:[#allocation5 + $0x78] sm:$0xff]
    %v150 = vld [vmem:[#allocation5 + $0x80] sm:$0xff]
    %v151 = vld [vmem:[#allocation5 + $0x88] sm:$0xff]
    %v152 = vld [vmem:[#allocation5 + $0x90] sm:$0xff]
    %v153 = vld [vmem:[#allocation5 + $0x98] sm:$0xff]
    %v154 = vld [vmem:[#allocation5 + $0xa0] sm:$0xff]
    %v155 = vld [vmem:[#allocation5 + $0xa8] sm:$0xff]
    %v156 = vld [vmem:[#allocation5 + $0xb0] sm:$0xff]
    %v157 = vld [vmem:[#allocation5 + $0xb8] sm:$0xff]
    %v158 = vld [vmem:[#allocation5 + $0xc0] sm:$0xff]
    %v159 = vld [vmem:[#allocation5 + $0xc8] sm:$0xff]
    %v160 = vld [vmem:[#allocation5 + $0xd0] sm:$0xff]
    %v161 = vld [vmem:[#allocation5 + $0xd8] sm:$0xff]
    %v162 = vld [vmem:[#allocation5 + $0xe0] sm:$0xff]
    %v163 = vld [vmem:[#allocation5 + $0xe8] sm:$0xff]
    %v164 = vld [vmem:[#allocation5 + $0xf0] sm:$0xff]
    %v165 = vld [vmem:[#allocation5 + $0xf8] sm:$0xff]
    %v166 = vld [vmem:[#allocation5 + $0x100] sm:$0xff]
    %v167 = vld [vmem:[#allocation5 + $0x108] sm:$0xff]
    %v168 = vld [vmem:[#allocation5 + $0x110] sm:$0xff]
    %v169 = vld [vmem:[#allocation5 + $0x118] sm:$0xff]
    %v170 = vld [vmem:[#allocation5 + $0x120] sm:$0xff]
    %v171 = vld [vmem:[#allocation5 + $0x128] sm:$0xff]
    %v172 = vld [vmem:[#allocation5 + $0x130] sm:$0xff]
    %v173 = vld [vmem:[#allocation5 + $0x138] sm:$0xff]
    %v174 = vld [vmem:[#allocation5 + $0x140] sm:$0xff]
    %v175 = vld [vmem:[#allocation5 + $0x148] sm:$0xff]
    %v176 = vld [vmem:[#allocation5 + $0x150] sm:$0xff]
    %v177 = vld [vmem:[#allocation5 + $0x158] sm:$0xff]
    %v178 = vld [vmem:[#allocation5 + $0x160] sm:$0xff]
    %v179 = vld [vmem:[#allocation5 + $0x168] sm:$0xff]
    %v180 = vld [vmem:[#allocation5 + $0x170] sm:$0xff]
    %v181 = vld [vmem:[#allocation5 + $0x178] sm:$0xff]
    %v182 = vld [vmem:[#allocation5 + $0x180] sm:$0xff]
    %v183 = vld [vmem:[#allocation5 + $0x188] sm:$0xff]
    %v184 = vld [vmem:[#allocation5 + $0x190] sm:$0xff]
    %v185 = vld [vmem:[#allocation5 + $0x198] sm:$0xff]
    %v186 = vld [vmem:[#allocation5 + $0x1a0] sm:$0xff]
    %v187 = vld [vmem:[#allocation5 + $0x1a8] sm:$0xff]
    %v188 = vld [vmem:[#allocation5 + $0x1b0] sm:$0xff]
    %v189 = vld [vmem:[#allocation5 + $0x1b8] sm:$0xff]
    %v190 = vld [vmem:[#allocation5 + $0x1c0] sm:$0xff]
    %v191 = vld [vmem:[#allocation5 + $0x1c8] sm:$0xff]
    %v192 = vld [vmem:[#allocation5 + $0x1d0] sm:$0xff]
    %v193 = vld [vmem:[#allocation5 + $0x1d8] sm:$0xff]
    %v194 = vld [vmem:[#allocation5 + $0x1e0] sm:$0xff]
    %v195 = vld [vmem:[#allocation5 + $0x1e8] sm:$0xff]
    %v196 = vld [vmem:[#allocation5 + $0x1f0] sm:$0xff]
    %v197 = vld [vmem:[#allocation5 + $0x1f8] sm:$0xff]
    %v198 = vld [vmem:[%s5] sm:$0xf]
    %v199 = vld [vmem:[%s0] sm:$0xff]
    %v200 = vld [vmem:[%s0 + $0x8] sm:$0xff]
    %v201 = vld [vmem:[%s1] sm:$0x7f]
    %v202 = vld [vmem:[%s1 + $0x8] sm:$0x7f]
    %v203 = vld [vmem:[%s1 + $0x10] sm:$0x7f]
    %v204 = vld [vmem:[%s1 + $0x18] sm:$0x7f]
    %v205 = vld [vmem:[%s2] sm:$0xf]
    %v207 = vlaneseq
    %v208 = vshrl.u32 %v207, 7
    %v209 = vsub.s32 0, %v208
    %v210 = vrot.slane %v205, %v209
    %v211 = vlaneseq
    %v212 = vshrl.u32 %v211, 7
    %v213 = vsub.s32 1, %v212
    %v214 = vrot.slane %v205, %v213
    %v215 = vlaneseq
    %v216 = vshrl.u32 %v215, 7
    %v217 = vsub.s32 2, %v216
    %v218 = vrot.slane %v205, %v217
    %v219 = vlaneseq
    %v220 = vshrl.u32 %v219, 7
    %v221 = vsub.s32 3, %v220
    %v222 = vrot.slane %v205, %v221
    %vm227 = vcmask 56320
    %v229 = vsel %vm227, %v199, 0
    %v232 = vsel %vm227, %v200, 0
    %vm234 = vcmask 1046528
    %v236 = vsel %vm234, %v201, 0
    %v239 = vsel %vm234, %v202, 0
    %v242 = vsel %vm234, %v203, 0
    %v245 = vsel %vm234, %v204, 0
    %247 = vmatprep.subr.mxu0 0.0
    %248 = vmatpush1.msra.mxu0 0.0
    %249 = vmatprep.subr.mxu0 0.0
    %250 = vmatpush1.msra.mxu0 0.0
    %251 = vmatprep.subr.mxu0 0.0
    %252 = vmatpush1.msra.mxu0 0.0
    %253 = vmatprep.subr.mxu0 0.0
    %254 = vmatpush1.msra.mxu0 0.0
    %255 = vmatprep.subr.mxu0 0.0
    %256 = vmatpush1.msra.mxu0 0.0
    %257 = vmatprep.subr.mxu0 0.0
    %258 = vmatpush1.msra.mxu0 0.0
    %259 = vmatprep.subr.mxu0 0.0
    %260 = vmatpush1.msra.mxu0 0.0
    %261 = vmatprep.subr.mxu0 0.0
    %262 = vmatpush1.msra.mxu0 0.0
    %263 = vmatprep.subr.mxu0 0.0
    %264 = vmatpush1.msra.mxu0 0.0
    %265 = vmatprep.subr.mxu0 0.0
    %266 = vmatpush1.msra.mxu0 0.0
    %267 = vmatprep.subr.mxu0 0.0
    %268 = vmatpush1.msra.mxu0 0.0
    %269 = vmatprep.subr.mxu0 0.0
    %270 = vmatpush1.msra.mxu0 0.0
    %271 = vmatprep.subr.mxu0 0.0
    %272 = vmatpush1.msra.mxu0 0.0
    %273 = vmatprep.subr.mxu0 0.0
    %274 = vmatpush1.msra.mxu0 0.0
    %275 = vmatprep.subr.mxu0 0.0
    %276 = vmatpush1.msra.mxu0 0.0
    %277 = vmatprep.subr.mxu0 %v239
    %278 = vmatpush1.msra.mxu0 %v236
    %279 = vmatprep.subr.mxu0 0.0
    %280 = vmatpush2.msra.mxu0 0.0
    %281 = vmatprep.subr.mxu0 0.0
    %282 = vmatpush2.msra.mxu0 0.0
    %283 = vmatprep.subr.mxu0 0.0
    %284 = vmatpush2.msra.mxu0 0.0
    %285 = vmatprep.subr.mxu0 0.0
    %286 = vmatpush2.msra.mxu0 0.0
    %287 = vmatprep.subr.mxu0 0.0
    %288 = vmatpush2.msra.mxu0 0.0
    %289 = vmatprep.subr.mxu0 0.0
    %290 = vmatpush2.msra.mxu0 0.0
    %291 = vmatprep.subr.mxu0 0.0
    %292 = vmatpush2.msra.mxu0 0.0
    %293 = vmatprep.subr.mxu0 0.0
    %294 = vmatpush2.msra.mxu0 0.0
    %295 = vmatprep.subr.mxu0 0.0
    %296 = vmatpush2.msra.mxu0 0.0
    %297 = vmatprep.subr.mxu0 0.0
    %298 = vmatpush2.msra.mxu0 0.0
    %299 = vmatprep.subr.mxu0 0.0
    %300 = vmatpush2.msra.mxu0 0.0
    %301 = vmatprep.subr.mxu0 0.0
    %302 = vmatpush2.msra.mxu0 0.0
    %303 = vmatprep.subr.mxu0 0.0
    %304 = vmatpush2.msra.mxu0 0.0
    %305 = vmatprep.subr.mxu0 0.0
    %306 = vmatpush2.msra.mxu0 0.0
    %307 = vmatprep.subr.mxu0 0.0
    %308 = vmatpush2.msra.mxu0 0.0
    %309 = vmatprep.subr.mxu0 0.0
    %310 = vmatpush2.msra.mxu0 0.0
    %311 = vmatprep.mubr.f32.mxu0 0.0
    %312 = vmatmul.mubr.f32.gmra.mxu0 %v229
    %v313 = vpop.f32.mrf.mxu0
    %v314 = vadd.f32 %v210, %v313
    %v315 = vpop.f32.mrf.mxu0
    %v316 = vadd.f32 %v214, %v315
    %317 = vmatprep.mubr.f32.mxu0 0.0
    %318 = vmatmul.mubr.f32.gmra.mxu0 %v232
    %v319 = vpop.f32.mrf.mxu0
    %v320 = vadd.f32 %v210, %v319
    %v321 = vpop.f32.mrf.mxu0
    %v322 = vadd.f32 %v214, %v321
    %323 = vdwg.mxu0
    %324 = vmatprep.subr.mxu0 0.0
    %325 = vmatpush1.msra.mxu0 0.0
    %326 = vmatprep.subr.mxu0 0.0
    %327 = vmatpush1.msra.mxu0 0.0
    %328 = vmatprep.subr.mxu0 0.0
    %329 = vmatpush1.msra.mxu0 0.0
    %330 = vmatprep.subr.mxu0 0.0
    %331 = vmatpush1.msra.mxu0 0.0
    %332 = vmatprep.subr.mxu0 0.0
    %333 = vmatpush1.msra.mxu0 0.0
    %334 = vmatprep.subr.mxu0 0.0
    %335 = vmatpush1.msra.mxu0 0.0
    %336 = vmatprep.subr.mxu0 0.0
    %337 = vmatpush1.msra.mxu0 0.0
    %338 = vmatprep.subr.mxu0 0.0
    %339 = vmatpush1.msra.mxu0 0.0
    %340 = vmatprep.subr.mxu0 0.0
    %341 = vmatpush1.msra.mxu0 0.0
    %342 = vmatprep.subr.mxu0 0.0
    %343 = vmatpush1.msra.mxu0 0.0
    %344 = vmatprep.subr.mxu0 0.0
    %345 = vmatpush1.msra.mxu0 0.0
    %346 = vmatprep.subr.mxu0 0.0
    %347 = vmatpush1.msra.mxu0 0.0
    %348 = vmatprep.subr.mxu0 0.0
    %349 = vmatpush1.msra.mxu0 0.0
    %350 = vmatprep.subr.mxu0 0.0
    %351 = vmatpush1.msra.mxu0 0.0
    %352 = vmatprep.subr.mxu0 0.0
    %353 = vmatpush1.msra.mxu0 0.0
    %354 = vmatprep.subr.mxu0 %v245
    %355 = vmatpush1.msra.mxu0 %v242
    %356 = vmatprep.subr.mxu0 0.0
    %357 = vmatpush2.msra.mxu0 0.0
    %358 = vmatprep.subr.mxu0 0.0
    %359 = vmatpush2.msra.mxu0 0.0
    %360 = vmatprep.subr.mxu0 0.0
    %361 = vmatpush2.msra.mxu0 0.0
    %362 = vmatprep.subr.mxu0 0.0
    %363 = vmatpush2.msra.mxu0 0.0
    %364 = vmatprep.subr.mxu0 0.0
    %365 = vmatpush2.msra.mxu0 0.0
    %366 = vmatprep.subr.mxu0 0.0
    %367 = vmatpush2.msra.mxu0 0.0
    %368 = vmatprep.subr.mxu0 0.0
    %369 = vmatpush2.msra.mxu0 0.0
    %370 = vmatprep.subr.mxu0 0.0
    %371 = vmatpush2.msra.mxu0 0.0
    %372 = vmatprep.subr.mxu0 0.0
    %373 = vmatpush2.msra.mxu0 0.0
    %374 = vmatprep.subr.mxu0 0.0
    %375 = vmatpush2.msra.mxu0 0.0
    %376 = vmatprep.subr.mxu0 0.0
    %377 = vmatpush2.msra.mxu0 0.0
    %378 = vmatprep.subr.mxu0 0.0
    %379 = vmatpush2.msra.mxu0 0.0
    %380 = vmatprep.subr.mxu0 0.0
    %381 = vmatpush2.msra.mxu0 0.0
    %382 = vmatprep.subr.mxu0 0.0
    %383 = vmatpush2.msra.mxu0 0.0
    %384 = vmatprep.subr.mxu0 0.0
    %385 = vmatpush2.msra.mxu0 0.0
    %386 = vmatprep.subr.mxu0 0.0
    %387 = vmatpush2.msra.mxu0 0.0
    %388 = vmatprep.mubr.f32.mxu0 0.0
    %389 = vmatmul.mubr.f32.gmra.mxu0 %v229
    %v390 = vpop.f32.mrf.mxu0
    %v391 = vadd.f32 %v218, %v390
    %v392 = vpop.f32.mrf.mxu0
    %v393 = vadd.f32 %v222, %v392
    %394 = vmatprep.mubr.f32.mxu0 0.0
    %395 = vmatmul.mubr.f32.gmra.mxu0 %v232
    %v396 = vpop.f32.mrf.mxu0
    %v397 = vadd.f32 %v218, %v396
    %v398 = vpop.f32.mrf.mxu0
    %v399 = vadd.f32 %v222, %v398
    %400 = vdwg.mxu0
    %v401 = vtanh.pop %v314
    %v402 = vtanh.pop %v391
    %v403 = vtanh.pop %v393
    %v404 = vmul.f32 %v401, 0.5
    %v405 = vadd.f32 %v404, 0.5
    %v406 = vmul.f32 %v403, 0.5
    %v407 = vadd.f32 %v406, 0.5
    %v408 = vmul.f32 %v405, %v402
    %v409 = vtanh.pop %v408
    %v410 = vmul.f32 %v407, %v409
    %411 = vmatprep.subr.mxu0 %v131
    %412 = vmatpush1.msra.mxu0 %v130
    %413 = vmatprep.subr.mxu0 %v127
    %414 = vmatpush1.msra.mxu0 %v126
    %415 = vmatprep.subr.mxu0 %v123
    %416 = vmatpush1.msra.mxu0 %v122
    %417 = vmatprep.subr.mxu0 %v119
    %418 = vmatpush1.msra.mxu0 %v118
    %419 = vmatprep.subr.mxu0 %v115
    %420 = vmatpush1.msra.mxu0 %v114
    %421 = vmatprep.subr.mxu0 %v111
    %422 = vmatpush1.msra.mxu0 %v110
    %423 = vmatprep.subr.mxu0 %v107
    %424 = vmatpush1.msra.mxu0 %v106
    %425 = vmatprep.subr.mxu0 %v103
    %426 = vmatpush1.msra.mxu0 %v102
    %427 = vmatprep.subr.mxu0 %v99
    %428 = vmatpush1.msra.mxu0 %v98
    %429 = vmatprep.subr.mxu0 %v95
    %430 = vmatpush1.msra.mxu0 %v94
    %431 = vmatprep.subr.mxu0 %v91
    %432 = vmatpush1.msra.mxu0 %v90
    %433 = vmatprep.subr.mxu0 %v87
    %434 = vmatpush1.msra.mxu0 %v86
    %435 = vmatprep.subr.mxu0 %v83
    %436 = vmatpush1.msra.mxu0 %v82
    %437 = vmatprep.subr.mxu0 %v79
    %438 = vmatpush1.msra.mxu0 %v78
    %439 = vmatprep.subr.mxu0 %v75
    %440 = vmatpush1.msra.mxu0 %v74
    %441 = vmatprep.subr.mxu0 %v71
    %442 = vmatpush1.msra.mxu0 %v70
    %443 = vmatprep.subr.mxu0 0.0
    %444 = vmatpush2.msra.mxu0 0.0
    %445 = vmatprep.subr.mxu0 0.0
    %446 = vmatpush2.msra.mxu0 0.0
    %447 = vmatprep.subr.mxu0 0.0
    %448 = vmatpush2.msra.mxu0 0.0
    %449 = vmatprep.subr.mxu0 0.0
    %450 = vmatpush2.msra.mxu0 0.0
    %451 = vmatprep.subr.mxu0 0.0
    %452 = vmatpush2.msra.mxu0 0.0
    %453 = vmatprep.subr.mxu0 0.0
    %454 = vmatpush2.msra.mxu0 0.0
    %455 = vmatprep.subr.mxu0 0.0
    %456 = vmatpush2.msra.mxu0 0.0
    %457 = vmatprep.subr.mxu0 0.0
    %458 = vmatpush2.msra.mxu0 0.0
    %459 = vmatprep.subr.mxu0 0.0
    %460 = vmatpush2.msra.mxu0 0.0
    %461 = vmatprep.subr.mxu0 0.0
    %462 = vmatpush2.msra.mxu0 0.0
    %463 = vmatprep.subr.mxu0 0.0
    %464 = vmatpush2.msra.mxu0 0.0
    %465 = vmatprep.subr.mxu0 0.0
    %466 = vmatpush2.msra.mxu0 0.0
    %467 = vmatprep.subr.mxu0 0.0
    %468 = vmatpush2.msra.mxu0 0.0
    %469 = vmatprep.subr.mxu0 0.0
    %470 = vmatpush2.msra.mxu0 0.0
    %471 = vmatprep.subr.mxu0 0.0
    %472 = vmatpush2.msra.mxu0 0.0
    %473 = vmatprep.subr.mxu0 0.0
    %474 = vmatpush2.msra.mxu0 0.0
    %475 = vmatprep.mubr.f32.mxu0 0.0
    %476 = vmatmul.mubr.f32.gmra.mxu0 %v410
    %v477 = vpop.f32.mrf.mxu0
    %v478 = vadd.f32 0.0, %v477
    %v479 = vpop.f32.mrf.mxu0
    %v480 = vadd.f32 0.0, %v479
    %481 = vdwg.mxu0
    %482 = vmatprep.subr.mxu0 %v133
    %483 = vmatpush1.msra.mxu0 %v132
    %484 = vmatprep.subr.mxu0 %v129
    %485 = vmatpush1.msra.mxu0 %v128
    %486 = vmatprep.subr.mxu0 %v125
    %487 = vmatpush1.msra.mxu0 %v124
    %488 = vmatprep.subr.mxu0 %v121
    %489 = vmatpush1.msra.mxu0 %v120
    %490 = vmatprep.subr.mxu0 %v117
    %491 = vmatpush1.msra.mxu0 %v116
    %492 = vmatprep.subr.mxu0 %v113
    %493 = vmatpush1.msra.mxu0 %v112
    %494 = vmatprep.subr.mxu0 %v109
    %495 = vmatpush1.msra.mxu0 %v108
    %496 = vmatprep.subr.mxu0 %v105
    %497 = vmatpush1.msra.mxu0 %v104
    %498 = vmatprep.subr.mxu0 %v101
    %499 = vmatpush1.msra.mxu0 %v100
    %500 = vmatprep.subr.mxu0 %v97
    %501 = vmatpush1.msra.mxu0 %v96
    %502 = vmatprep.subr.mxu0 %v93
    %503 = vmatpush1.msra.mxu0 %v92
    %504 = vmatprep.subr.mxu0 %v89
    %505 = vmatpush1.msra.mxu0 %v88
    %506 = vmatprep.subr.mxu0 %v85
    %507 = vmatpush1.msra.mxu0 %v84
    %508 = vmatprep.subr.mxu0 %v81
    %509 = vmatpush1.msra.mxu0 %v80
    %510 = vmatprep.subr.mxu0 %v77
    %511 = vmatpush1.msra.mxu0 %v76
    %512 = vmatprep.subr.mxu0 %v73
    %513 = vmatpush1.msra.mxu0 %v72
    %514 = vmatprep.subr.mxu0 0.0
    %515 = vmatpush2.msra.mxu0 0.0
    %516 = vmatprep.subr.mxu0 0.0
    %517 = vmatpush2.msra.mxu0 0.0
    %518 = vmatprep.subr.mxu0 0.0
    %519 = vmatpush2.msra.mxu0 0.0
    %520 = vmatprep.subr.mxu0 0.0
    %521 = vmatpush2.msra.mxu0 0.0
    %522 = vmatprep.subr.mxu0 0.0
    %523 = vmatpush2.msra.mxu0 0.0
    %524 = vmatprep.subr.mxu0 0.0
    %525 = vmatpush2.msra.mxu0 0.0
    %526 = vmatprep.subr.mxu0 0.0
    %527 = vmatpush2.msra.mxu0 0.0
    %528 = vmatprep.subr.mxu0 0.0
    %529 = vmatpush2.msra.mxu0 0.0
    %530 = vmatprep.subr.mxu0 0.0
    %531 = vmatpush2.msra.mxu0 0.0
    %532 = vmatprep.subr.mxu0 0.0
    %533 = vmatpush2.msra.mxu0 0.0
    %534 = vmatprep.subr.mxu0 0.0
    %535 = vmatpush2.msra.mxu0 0.0
    %536 = vmatprep.subr.mxu0 0.0
    %537 = vmatpush2.msra.mxu0 0.0
    %538 = vmatprep.subr.mxu0 0.0
    %539 = vmatpush2.msra.mxu0 0.0
    %540 = vmatprep.subr.mxu0 0.0
    %541 = vmatpush2.msra.mxu0 0.0
    %542 = vmatprep.subr.mxu0 0.0
    %543 = vmatpush2.msra.mxu0 0.0
    %544 = vmatprep.subr.mxu0 0.0
    %545 = vmatpush2.msra.mxu0 0.0
    %546 = vmatprep.mubr.f32.mxu0 0.0
    %547 = vmatmul.mubr.f32.gmra.mxu0 %v410
    %v548 = vpop.f32.mrf.mxu0
    %v549 = vadd.f32 0.0, %v548
    %v550 = vpop.f32.mrf.mxu0
    %v551 = vadd.f32 0.0, %v550
    %552 = vdwg.mxu0
    %v557 = vrot.slane %v478, 6
    %v558 = vrot.slane %v480, 6
    %v559 = vrot.slane %v549, 6
    %v560 = vrot.slane %v551, 6
    %v565 = vadd.f32 %v314, %v557
    %v566 = vadd.f32 %v316, %v558
    %v567 = vadd.f32 %v391, %v559
    %v568 = vadd.f32 %v393, %v560
    %v569 = vtanh.pop %v565
    %v570 = vtanh.pop %v566
    %v571 = vtanh.pop %v567
    %v572 = vtanh.pop %v568
    %v573 = vmul.f32 %v569, 0.5
    %v574 = vadd.f32 %v573, 0.5
    %v575 = vmul.f32 %v570, 0.5
    %v576 = vadd.f32 %v575, 0.5
    %v577 = vmul.f32 %v572, 0.5
    %v578 = vadd.f32 %v577, 0.5
    %v580 = vrot.slane %v408, 6
    %v582 = vmul.f32 %v576, %v580
    %v583 = vmul.f32 %v574, %v571
    %v584 = vadd.f32 %v582, %v583
    %v585 = vtanh.pop %v584
    %v586 = vmul.f32 %v578, %v585
    %587 = vst [vmem:[#allocation2 - $0x2] sm:$0xc] %v586
    %v589 = vrot.slane %v586, 2
    %591 = vmatprep.subr.mxu0 %v131
    %592 = vmatpush1.msra.mxu0 %v130
    %593 = vmatprep.subr.mxu0 %v127
    %594 = vmatpush1.msra.mxu0 %v126
    %595 = vmatprep.subr.mxu0 %v123
    %596 = vmatpush1.msra.mxu0 %v122
    %597 = vmatprep.subr.mxu0 %v119
    %598 = vmatpush1.msra.mxu0 %v118
    %599 = vmatprep.subr.mxu0 %v115
    %600 = vmatpush1.msra.mxu0 %v114
    %601 = vmatprep.subr.mxu0 %v111
    %602 = vmatpush1.msra.mxu0 %v110
    %603 = vmatprep.subr.mxu0 %v107
    %604 = vmatpush1.msra.mxu0 %v106
    %605 = vmatprep.subr.mxu0 %v103
    %606 = vmatpush1.msra.mxu0 %v102
    %607 = vmatprep.subr.mxu0 %v99
    %608 = vmatpush1.msra.mxu0 %v98
    %609 = vmatprep.subr.mxu0 %v95
    %610 = vmatpush1.msra.mxu0 %v94
    %611 = vmatprep.subr.mxu0 %v91
    %612 = vmatpush1.msra.mxu0 %v90
    %613 = vmatprep.subr.mxu0 %v87
    %614 = vmatpush1.msra.mxu0 %v86
    %615 = vmatprep.subr.mxu0 %v83
    %616 = vmatpush1.msra.mxu0 %v82
    %617 = vmatprep.subr.mxu0 %v79
    %618 = vmatpush1.msra.mxu0 %v78
    %619 = vmatprep.subr.mxu0 %v75
    %620 = vmatpush1.msra.mxu0 %v74
    %621 = vmatprep.subr.mxu0 %v71
    %622 = vmatpush1.msra.mxu0 %v70
    %623 = vmatprep.subr.mxu0 0.0
    %624 = vmatpush2.msra.mxu0 0.0
    %625 = vmatprep.subr.mxu0 0.0
    %626 = vmatpush2.msra.mxu0 0.0
    %627 = vmatprep.subr.mxu0 0.0
    %628 = vmatpush2.msra.mxu0 0.0
    %629 = vmatprep.subr.mxu0 0.0
    %630 = vmatpush2.msra.mxu0 0.0
    %631 = vmatprep.subr.mxu0 0.0
    %632 = vmatpush2.msra.mxu0 0.0
    %633 = vmatprep.subr.mxu0 0.0
    %634 = vmatpush2.msra.mxu0 0.0
    %635 = vmatprep.subr.mxu0 0.0
    %636 = vmatpush2.msra.mxu0 0.0
    %637 = vmatprep.subr.mxu0 0.0
    %638 = vmatpush2.msra.mxu0 0.0
    %639 = vmatprep.subr.mxu0 0.0
    %640 = vmatpush2.msra.mxu0 0.0
    %641 = vmatprep.subr.mxu0 0.0
    %642 = vmatpush2.msra.mxu0 0.0
    %643 = vmatprep.subr.mxu0 0.0
    %644 = vmatpush2.msra.mxu0 0.0
    %645 = vmatprep.subr.mxu0 0.0
    %646 = vmatpush2.msra.mxu0 0.0
    %647 = vmatprep.subr.mxu0 0.0
    %648 = vmatpush2.msra.mxu0 0.0
    %649 = vmatprep.subr.mxu0 0.0
    %650 = vmatpush2.msra.mxu0 0.0
    %651 = vmatprep.subr.mxu0 0.0
    %652 = vmatpush2.msra.mxu0 0.0
    %653 = vmatprep.subr.mxu0 0.0
    %654 = vmatpush2.msra.mxu0 0.0
    %655 = vmatprep.mubr.f32.mxu0 0.0
    %656 = vmatmul.mubr.f32.gmra.mxu0 %v589
    %v657 = vpop.f32.mrf.mxu0
    %v658 = vadd.f32 0.0, %v657
    %v659 = vpop.f32.mrf.mxu0
    %v660 = vadd.f32 0.0, %v659
    %661 = vdwg.mxu0
    %662 = vmatprep.subr.mxu0 %v133
    %663 = vmatpush1.msra.mxu0 %v132
    %664 = vmatprep.subr.mxu0 %v129
    %665 = vmatpush1.msra.mxu0 %v128
    %666 = vmatprep.subr.mxu0 %v125
    %667 = vmatpush1.msra.mxu0 %v124
    %668 = vmatprep.subr.mxu0 %v121
    %669 = vmatpush1.msra.mxu0 %v120
    %670 = vmatprep.subr.mxu0 %v117
    %671 = vmatpush1.msra.mxu0 %v116
    %672 = vmatprep.subr.mxu0 %v113
    %673 = vmatpush1.msra.mxu0 %v112
    %674 = vmatprep.subr.mxu0 %v109
    %675 = vmatpush1.msra.mxu0 %v108
    %676 = vmatprep.subr.mxu0 %v105
    %677 = vmatpush1.msra.mxu0 %v104
    %678 = vmatprep.subr.mxu0 %v101
    %679 = vmatpush1.msra.mxu0 %v100
    %680 = vmatprep.subr.mxu0 %v97
    %681 = vmatpush1.msra.mxu0 %v96
    %682 = vmatprep.subr.mxu0 %v93
    %683 = vmatpush1.msra.mxu0 %v92
    %684 = vmatprep.subr.mxu0 %v89
    %685 = vmatpush1.msra.mxu0 %v88
    %686 = vmatprep.subr.mxu0 %v85
    %687 = vmatpush1.msra.mxu0 %v84
    %688 = vmatprep.subr.mxu0 %v81
    %689 = vmatpush1.msra.mxu0 %v80
    %690 = vmatprep.subr.mxu0 %v77
    %691 = vmatpush1.msra.mxu0 %v76
    %692 = vmatprep.subr.mxu0 %v73
    %693 = vmatpush1.msra.mxu0 %v72
    %694 = vmatprep.subr.mxu0 0.0
    %695 = vmatpush2.msra.mxu0 0.0
    %696 = vmatprep.subr.mxu0 0.0
    %697 = vmatpush2.msra.mxu0 0.0
    %698 = vmatprep.subr.mxu0 0.0
    %699 = vmatpush2.msra.mxu0 0.0
    %700 = vmatprep.subr.mxu0 0.0
    %701 = vmatpush2.msra.mxu0 0.0
    %702 = vmatprep.subr.mxu0 0.0
    %703 = vmatpush2.msra.mxu0 0.0
    %704 = vmatprep.subr.mxu0 0.0
    %705 = vmatpush2.msra.mxu0 0.0
    %706 = vmatprep.subr.mxu0 0.0
    %707 = vmatpush2.msra.mxu0 0.0
    %708 = vmatprep.subr.mxu0 0.0
    %709 = vmatpush2.msra.mxu0 0.0
    %710 = vmatprep.subr.mxu0 0.0
    %711 = vmatpush2.msra.mxu0 0.0
    %712 = vmatprep.subr.mxu0 0.0
    %713 = vmatpush2.msra.mxu0 0.0
    %714 = vmatprep.subr.mxu0 0.0
    %715 = vmatpush2.msra.mxu0 0.0
    %716 = vmatprep.subr.mxu0 0.0
    %717 = vmatpush2.msra.mxu0 0.0
    %718 = vmatprep.subr.mxu0 0.0
    %719 = vmatpush2.msra.mxu0 0.0
    %720 = vmatprep.subr.mxu0 0.0
    %721 = vmatpush2.msra.mxu0 0.0
    %722 = vmatprep.subr.mxu0 0.0
    %723 = vmatpush2.msra.mxu0 0.0
    %724 = vmatprep.subr.mxu0 0.0
    %725 = vmatpush2.msra.mxu0 0.0
    %726 = vmatprep.mubr.f32.mxu0 0.0
    %727 = vmatmul.mubr.f32.gmra.mxu0 %v589
    %v728 = vpop.f32.mrf.mxu0
    %v729 = vadd.f32 0.0, %v728
    %v730 = vpop.f32.mrf.mxu0
    %v731 = vadd.f32 0.0, %v730
    %732 = vdwg.mxu0
    %v737 = vrot.slane %v658, 4
    %v738 = vrot.slane %v660, 4
    %v739 = vrot.slane %v729, 4
    %v740 = vrot.slane %v731, 4
    %v745 = vadd.f32 %v314, %v737
    %v746 = vadd.f32 %v316, %v738
    %v747 = vadd.f32 %v391, %v739
    %v748 = vadd.f32 %v393, %v740
    %v749 = vtanh.pop %v745
    %v750 = vtanh.pop %v746
    %v751 = vtanh.pop %v747
    %v752 = vtanh.pop %v748
    %v753 = vmul.f32 %v749, 0.5
    %v754 = vadd.f32 %v753, 0.5
    %v755 = vmul.f32 %v750, 0.5
    %v756 = vadd.f32 %v755, 0.5
    %v757 = vmul.f32 %v752, 0.5
    %v758 = vadd.f32 %v757, 0.5
    %v760 = vrot.slane %v584, 6
    %v762 = vmul.f32 %v756, %v760
    %v763 = vmul.f32 %v754, %v751
    %v764 = vadd.f32 %v762, %v763
    %v765 = vtanh.pop %v764
    %v766 = vmul.f32 %v758, %v765
    %767 = vst [vmem:[#allocation2 - $0x2] sm:$0x30] %v766
    %v769 = vrot.slane %v766, 4
    %771 = vmatprep.subr.mxu0 %v131
    %772 = vmatpush1.msra.mxu0 %v130
    %773 = vmatprep.subr.mxu0 %v127
    %774 = vmatpush1.msra.mxu0 %v126
    %775 = vmatprep.subr.mxu0 %v123
    %776 = vmatpush1.msra.mxu0 %v122
    %777 = vmatprep.subr.mxu0 %v119
    %778 = vmatpush1.msra.mxu0 %v118
    %779 = vmatprep.subr.mxu0 %v115
    %780 = vmatpush1.msra.mxu0 %v114
    %781 = vmatprep.subr.mxu0 %v111
    %782 = vmatpush1.msra.mxu0 %v110
    %783 = vmatprep.subr.mxu0 %v107
    %784 = vmatpush1.msra.mxu0 %v106
    %785 = vmatprep.subr.mxu0 %v103
    %786 = vmatpush1.msra.mxu0 %v102
    %787 = vmatprep.subr.mxu0 %v99
    %788 = vmatpush1.msra.mxu0 %v98
    %789 = vmatprep.subr.mxu0 %v95
    %790 = vmatpush1.msra.mxu0 %v94
    %791 = vmatprep.subr.mxu0 %v91
    %792 = vmatpush1.msra.mxu0 %v90
    %793 = vmatprep.subr.mxu0 %v87
    %794 = vmatpush1.msra.mxu0 %v86
    %795 = vmatprep.subr.mxu0 %v83
    %796 = vmatpush1.msra.mxu0 %v82
    %797 = vmatprep.subr.mxu0 %v79
    %798 = vmatpush1.msra.mxu0 %v78
    %799 = vmatprep.subr.mxu0 %v75
    %800 = vmatpush1.msra.mxu0 %v74
    %801 = vmatprep.subr.mxu0 %v71
    %802 = vmatpush1.msra.mxu0 %v70
    %803 = vmatprep.subr.mxu0 0.0
    %804 = vmatpush2.msra.mxu0 0.0
    %805 = vmatprep.subr.mxu0 0.0
    %806 = vmatpush2.msra.mxu0 0.0
    %807 = vmatprep.subr.mxu0 0.0
    %808 = vmatpush2.msra.mxu0 0.0
    %809 = vmatprep.subr.mxu0 0.0
    %810 = vmatpush2.msra.mxu0 0.0
    %811 = vmatprep.subr.mxu0 0.0
    %812 = vmatpush2.msra.mxu0 0.0
    %813 = vmatprep.subr.mxu0 0.0
    %814 = vmatpush2.msra.mxu0 0.0
    %815 = vmatprep.subr.mxu0 0.0
    %816 = vmatpush2.msra.mxu0 0.0
    %817 = vmatprep.subr.mxu0 0.0
    %818 = vmatpush2.msra.mxu0 0.0
    %819 = vmatprep.subr.mxu0 0.0
    %820 = vmatpush2.msra.mxu0 0.0
    %821 = vmatprep.subr.mxu0 0.0
    %822 = vmatpush2.msra.mxu0 0.0
    %823 = vmatprep.subr.mxu0 0.0
    %824 = vmatpush2.msra.mxu0 0.0
    %825 = vmatprep.subr.mxu0 0.0
    %826 = vmatpush2.msra.mxu0 0.0
    %827 = vmatprep.subr.mxu0 0.0
    %828 = vmatpush2.msra.mxu0 0.0
    %829 = vmatprep.subr.mxu0 0.0
    %830 = vmatpush2.msra.mxu0 0.0
    %831 = vmatprep.subr.mxu0 0.0
    %832 = vmatpush2.msra.mxu0 0.0
    %833 = vmatprep.subr.mxu0 0.0
    %834 = vmatpush2.msra.mxu0 0.0
    %835 = vmatprep.mubr.f32.mxu0 0.0
    %836 = vmatmul.mubr.f32.gmra.mxu0 %v769
    %v837 = vpop.f32.mrf.mxu0
    %v838 = vadd.f32 0.0, %v837
    %v839 = vpop.f32.mrf.mxu0
    %v840 = vadd.f32 0.0, %v839
    %841 = vdwg.mxu0
    %842 = vmatprep.subr.mxu0 %v133
    %843 = vmatpush1.msra.mxu0 %v132
    %844 = vmatprep.subr.mxu0 %v129
    %845 = vmatpush1.msra.mxu0 %v128
    %846 = vmatprep.subr.mxu0 %v125
    %847 = vmatpush1.msra.mxu0 %v124
    %848 = vmatprep.subr.mxu0 %v121
    %849 = vmatpush1.msra.mxu0 %v120
    %850 = vmatprep.subr.mxu0 %v117
    %851 = vmatpush1.msra.mxu0 %v116
    %852 = vmatprep.subr.mxu0 %v113
    %853 = vmatpush1.msra.mxu0 %v112
    %854 = vmatprep.subr.mxu0 %v109
    %855 = vmatpush1.msra.mxu0 %v108
    %856 = vmatprep.subr.mxu0 %v105
    %857 = vmatpush1.msra.mxu0 %v104
    %858 = vmatprep.subr.mxu0 %v101
    %859 = vmatpush1.msra.mxu0 %v100
    %860 = vmatprep.subr.mxu0 %v97
    %861 = vmatpush1.msra.mxu0 %v96
    %862 = vmatprep.subr.mxu0 %v93
    %863 = vmatpush1.msra.mxu0 %v92
    %864 = vmatprep.subr.mxu0 %v89
    %865 = vmatpush1.msra.mxu0 %v88
    %866 = vmatprep.subr.mxu0 %v85
    %867 = vmatpush1.msra.mxu0 %v84
    %868 = vmatprep.subr.mxu0 %v81
    %869 = vmatpush1.msra.mxu0 %v80
    %870 = vmatprep.subr.mxu0 %v77
    %871 = vmatpush1.msra.mxu0 %v76
    %872 = vmatprep.subr.mxu0 %v73
    %873 = vmatpush1.msra.mxu0 %v72
    %874 = vmatprep.subr.mxu0 0.0
    %875 = vmatpush2.msra.mxu0 0.0
    %876 = vmatprep.subr.mxu0 0.0
    %877 = vmatpush2.msra.mxu0 0.0
    %878 = vmatprep.subr.mxu0 0.0
    %879 = vmatpush2.msra.mxu0 0.0
    %880 = vmatprep.subr.mxu0 0.0
    %881 = vmatpush2.msra.mxu0 0.0
    %882 = vmatprep.subr.mxu0 0.0
    %883 = vmatpush2.msra.mxu0 0.0
    %884 = vmatprep.subr.mxu0 0.0
    %885 = vmatpush2.msra.mxu0 0.0
    %886 = vmatprep.subr.mxu0 0.0
    %887 = vmatpush2.msra.mxu0 0.0
    %888 = vmatprep.subr.mxu0 0.0
    %889 = vmatpush2.msra.mxu0 0.0
    %890 = vmatprep.subr.mxu0 0.0
    %891 = vmatpush2.msra.mxu0 0.0
    %892 = vmatprep.subr.mxu0 0.0
    %893 = vmatpush2.msra.mxu0 0.0
    %894 = vmatprep.subr.mxu0 0.0
    %895 = vmatpush2.msra.mxu0 0.0
    %896 = vmatprep.subr.mxu0 0.0
    %897 = vmatpush2.msra.mxu0 0.0
    %898 = vmatprep.subr.mxu0 0.0
    %899 = vmatpush2.msra.mxu0 0.0
    %900 = vmatprep.subr.mxu0 0.0
    %901 = vmatpush2.msra.mxu0 0.0
    %902 = vmatprep.subr.mxu0 0.0
    %903 = vmatpush2.msra.mxu0 0.0
    %904 = vmatprep.subr.mxu0 0.0
    %905 = vmatpush2.msra.mxu0 0.0
    %906 = vmatprep.mubr.f32.mxu0 0.0
    %907 = vmatmul.mubr.f32.gmra.mxu0 %v769
    %v908 = vpop.f32.mrf.mxu0
    %v909 = vadd.f32 0.0, %v908
    %v910 = vpop.f32.mrf.mxu0
    %v911 = vadd.f32 0.0, %v910
    %912 = vdwg.mxu0
    %v917 = vrot.slane %v838, 2
    %v918 = vrot.slane %v840, 2
    %v919 = vrot.slane %v909, 2
    %v920 = vrot.slane %v911, 2
    %v925 = vadd.f32 %v314, %v917
    %v926 = vadd.f32 %v316, %v918
    %v927 = vadd.f32 %v391, %v919
    %v928 = vadd.f32 %v393, %v920
    %v929 = vtanh.pop %v925
    %v930 = vtanh.pop %v926
    %v931 = vtanh.pop %v927
    %v932 = vtanh.pop %v928
    %v933 = vmul.f32 %v929, 0.5
    %v934 = vadd.f32 %v933, 0.5
    %v935 = vmul.f32 %v930, 0.5
    %v936 = vadd.f32 %v935, 0.5
    %v937 = vmul.f32 %v932, 0.5
    %v938 = vadd.f32 %v937, 0.5
    %v940 = vrot.slane %v764, 6
    %v942 = vmul.f32 %v936, %v940
    %v943 = vmul.f32 %v934, %v931
    %v944 = vadd.f32 %v942, %v943
    %v945 = vtanh.pop %v944
    %v946 = vmul.f32 %v938, %v945
    %947 = vst [vmem:[#allocation2 - $0x2] sm:$0xc0] %v946
    %v949 = vrot.slane %v946, 6
    %951 = vmatprep.subr.mxu0 %v131
    %952 = vmatpush1.msra.mxu0 %v130
    %953 = vmatprep.subr.mxu0 %v127
    %954 = vmatpush1.msra.mxu0 %v126
    %955 = vmatprep.subr.mxu0 %v123
    %956 = vmatpush1.msra.mxu0 %v122
    %957 = vmatprep.subr.mxu0 %v119
    %958 = vmatpush1.msra.mxu0 %v118
    %959 = vmatprep.subr.mxu0 %v115
    %960 = vmatpush1.msra.mxu0 %v114
    %961 = vmatprep.subr.mxu0 %v111
    %962 = vmatpush1.msra.mxu0 %v110
    %963 = vmatprep.subr.mxu0 %v107
    %964 = vmatpush1.msra.mxu0 %v106
    %965 = vmatprep.subr.mxu0 %v103
    %966 = vmatpush1.msra.mxu0 %v102
    %967 = vmatprep.subr.mxu0 %v99
    %968 = vmatpush1.msra.mxu0 %v98
    %969 = vmatprep.subr.mxu0 %v95
    %970 = vmatpush1.msra.mxu0 %v94
    %971 = vmatprep.subr.mxu0 %v91
    %972 = vmatpush1.msra.mxu0 %v90
    %973 = vmatprep.subr.mxu0 %v87
    %974 = vmatpush1.msra.mxu0 %v86
    %975 = vmatprep.subr.mxu0 %v83
    %976 = vmatpush1.msra.mxu0 %v82
    %977 = vmatprep.subr.mxu0 %v79
    %978 = vmatpush1.msra.mxu0 %v78
    %979 = vmatprep.subr.mxu0 %v75
    %980 = vmatpush1.msra.mxu0 %v74
    %981 = vmatprep.subr.mxu0 %v71
    %982 = vmatpush1.msra.mxu0 %v70
    %983 = vmatprep.subr.mxu0 0.0
    %984 = vmatpush2.msra.mxu0 0.0
    %985 = vmatprep.subr.mxu0 0.0
    %986 = vmatpush2.msra.mxu0 0.0
    %987 = vmatprep.subr.mxu0 0.0
    %988 = vmatpush2.msra.mxu0 0.0
    %989 = vmatprep.subr.mxu0 0.0
    %990 = vmatpush2.msra.mxu0 0.0
    %991 = vmatprep.subr.mxu0 0.0
    %992 = vmatpush2.msra.mxu0 0.0
    %993 = vmatprep.subr.mxu0 0.0
    %994 = vmatpush2.msra.mxu0 0.0
    %995 = vmatprep.subr.mxu0 0.0
    %996 = vmatpush2.msra.mxu0 0.0
    %997 = vmatprep.subr.mxu0 0.0
    %998 = vmatpush2.msra.mxu0 0.0
    %999 = vmatprep.subr.mxu0 0.0
    %1000 = vmatpush2.msra.mxu0 0.0
    %1001 = vmatprep.subr.mxu0 0.0
    %1002 = vmatpush2.msra.mxu0 0.0
    %1003 = vmatprep.subr.mxu0 0.0
    %1004 = vmatpush2.msra.mxu0 0.0
    %1005 = vmatprep.subr.mxu0 0.0
    %1006 = vmatpush2.msra.mxu0 0.0
    %1007 = vmatprep.subr.mxu0 0.0
    %1008 = vmatpush2.msra.mxu0 0.0
    %1009 = vmatprep.subr.mxu0 0.0
    %1010 = vmatpush2.msra.mxu0 0.0
    %1011 = vmatprep.subr.mxu0 0.0
    %1012 = vmatpush2.msra.mxu0 0.0
    %1013 = vmatprep.subr.mxu0 0.0
    %1014 = vmatpush2.msra.mxu0 0.0
    %1015 = vmatprep.mubr.f32.mxu0 0.0
    %1016 = vmatmul.mubr.f32.gmra.mxu0 %v949
    %v1017 = vpop.f32.mrf.mxu0
    %v1018 = vadd.f32 0.0, %v1017
    %v1019 = vpop.f32.mrf.mxu0
    %v1020 = vadd.f32 0.0, %v1019
    %1021 = vdwg.mxu0
    %1022 = vmatprep.subr.mxu0 %v133
    %1023 = vmatpush1.msra.mxu0 %v132
    %1024 = vmatprep.subr.mxu0 %v129
    %1025 = vmatpush1.msra.mxu0 %v128
    %1026 = vmatprep.subr.mxu0 %v125
    %1027 = vmatpush1.msra.mxu0 %v124
    %1028 = vmatprep.subr.mxu0 %v121
    %1029 = vmatpush1.msra.mxu0 %v120
    %1030 = vmatprep.subr.mxu0 %v117
    %1031 = vmatpush1.msra.mxu0 %v116
    %1032 = vmatprep.subr.mxu0 %v113
    %1033 = vmatpush1.msra.mxu0 %v112
    %1034 = vmatprep.subr.mxu0 %v109
    %1035 = vmatpush1.msra.mxu0 %v108
    %1036 = vmatprep.subr.mxu0 %v105
    %1037 = vmatpush1.msra.mxu0 %v104
    %1038 = vmatprep.subr.mxu0 %v101
    %1039 = vmatpush1.msra.mxu0 %v100
    %1040 = vmatprep.subr.mxu0 %v97
    %1041 = vmatpush1.msra.mxu0 %v96
    %1042 = vmatprep.subr.mxu0 %v93
    %1043 = vmatpush1.msra.mxu0 %v92
    %1044 = vmatprep.subr.mxu0 %v89
    %1045 = vmatpush1.msra.mxu0 %v88
    %1046 = vmatprep.subr.mxu0 %v85
    %1047 = vmatpush1.msra.mxu0 %v84
    %1048 = vmatprep.subr.mxu0 %v81
    %1049 = vmatpush1.msra.mxu0 %v80
    %1050 = vmatprep.subr.mxu0 %v77
    %1051 = vmatpush1.msra.mxu0 %v76
    %1052 = vmatprep.subr.mxu0 %v73
    %1053 = vmatpush1.msra.mxu0 %v72
    %1054 = vmatprep.subr.mxu0 0.0
    %1055 = vmatpush2.msra.mxu0 0.0
    %1056 = vmatprep.subr.mxu0 0.0
    %1057 = vmatpush2.msra.mxu0 0.0
    %1058 = vmatprep.subr.mxu0 0.0
    %1059 = vmatpush2.msra.mxu0 0.0
    %1060 = vmatprep.subr.mxu0 0.0
    %1061 = vmatpush2.msra.mxu0 0.0
    %1062 = vmatprep.subr.mxu0 0.0
    %1063 = vmatpush2.msra.mxu0 0.0
    %1064 = vmatprep.subr.mxu0 0.0
    %1065 = vmatpush2.msra.mxu0 0.0
    %1066 = vmatprep.subr.mxu0 0.0
    %1067 = vmatpush2.msra.mxu0 0.0
    %1068 = vmatprep.subr.mxu0 0.0
    %1069 = vmatpush2.msra.mxu0 0.0
    %1070 = vmatprep.subr.mxu0 0.0
    %1071 = vmatpush2.msra.mxu0 0.0
    %1072 = vmatprep.subr.mxu0 0.0
    %1073 = vmatpush2.msra.mxu0 0.0
    %1074 = vmatprep.subr.mxu0 0.0
    %1075 = vmatpush2.msra.mxu0 0.0
    %1076 = vmatprep.subr.mxu0 0.0
    %1077 = vmatpush2.msra.mxu0 0.0
    %1078 = vmatprep.subr.mxu0 0.0
    %1079 = vmatpush2.msra.mxu0 0.0
    %1080 = vmatprep.subr.mxu0 0.0
    %1081 = vmatpush2.msra.mxu0 0.0
    %1082 = vmatprep.subr.mxu0 0.0
    %1083 = vmatpush2.msra.mxu0 0.0
    %1084 = vmatprep.subr.mxu0 0.0
    %1085 = vmatpush2.msra.mxu0 0.0
    %1086 = vmatprep.mubr.f32.mxu0 0.0
    %1087 = vmatmul.mubr.f32.gmra.mxu0 %v949
    %v1088 = vpop.f32.mrf.mxu0
    %v1089 = vadd.f32 0.0, %v1088
    %v1090 = vpop.f32.mrf.mxu0
    %v1091 = vadd.f32 0.0, %v1090
    %1092 = vdwg.mxu0
    %v1093 = vadd.f32 %v320, %v1018
    %v1094 = vadd.f32 %v322, %v1020
    %v1095 = vadd.f32 %v397, %v1089
    %v1096 = vadd.f32 %v399, %v1091
    %v1097 = vtanh.pop %v1093
    %v1098 = vtanh.pop %v1094
    %v1099 = vtanh.pop %v1095
    %v1100 = vtanh.pop %v1096
    %v1101 = vmul.f32 %v1097, 0.5
    %v1102 = vadd.f32 %v1101, 0.5
    %v1103 = vmul.f32 %v1098, 0.5
    %v1104 = vadd.f32 %v1103, 0.5
    %v1105 = vmul.f32 %v1100, 0.5
    %v1106 = vadd.f32 %v1105, 0.5
    %v1108 = vrot.slane %v944, 6
    %v1110 = vmul.f32 %v1104, %v1108
    %v1111 = vmul.f32 %v1102, %v1099
    %v1112 = vadd.f32 %v1110, %v1111
    %v1113 = vtanh.pop %v1112
    %v1114 = vmul.f32 %v1106, %v1113
    %1115 = vst [vmem:[#allocation2 + $0x6] sm:$0x3] %v1114
    %1116 = vmatprep.subr.mxu0 %v131
    %1117 = vmatpush1.msra.mxu0 %v130
    %1118 = vmatprep.subr.mxu0 %v127
    %1119 = vmatpush1.msra.mxu0 %v126
    %1120 = vmatprep.subr.mxu0 %v123
    %1121 = vmatpush1.msra.mxu0 %v122
    %1122 = vmatprep.subr.mxu0 %v119
    %1123 = vmatpush1.msra.mxu0 %v118
    %1124 = vmatprep.subr.mxu0 %v115
    %1125 = vmatpush1.msra.mxu0 %v114
    %1126 = vmatprep.subr.mxu0 %v111
    %1127 = vmatpush1.msra.mxu0 %v110
    %1128 = vmatprep.subr.mxu0 %v107
    %1129 = vmatpush1.msra.mxu0 %v106
    %1130 = vmatprep.subr.mxu0 %v103
    %1131 = vmatpush1.msra.mxu0 %v102
    %1132 = vmatprep.subr.mxu0 %v99
    %1133 = vmatpush1.msra.mxu0 %v98
    %1134 = vmatprep.subr.mxu0 %v95
    %1135 = vmatpush1.msra.mxu0 %v94
    %1136 = vmatprep.subr.mxu0 %v91
    %1137 = vmatpush1.msra.mxu0 %v90
    %1138 = vmatprep.subr.mxu0 %v87
    %1139 = vmatpush1.msra.mxu0 %v86
    %1140 = vmatprep.subr.mxu0 %v83
    %1141 = vmatpush1.msra.mxu0 %v82
    %1142 = vmatprep.subr.mxu0 %v79
    %1143 = vmatpush1.msra.mxu0 %v78
    %1144 = vmatprep.subr.mxu0 %v75
    %1145 = vmatpush1.msra.mxu0 %v74
    %1146 = vmatprep.subr.mxu0 %v71
    %1147 = vmatpush1.msra.mxu0 %v70
    %1148 = vmatprep.subr.mxu0 0.0
    %1149 = vmatpush2.msra.mxu0 0.0
    %1150 = vmatprep.subr.mxu0 0.0
    %1151 = vmatpush2.msra.mxu0 0.0
    %1152 = vmatprep.subr.mxu0 0.0
    %1153 = vmatpush2.msra.mxu0 0.0
    %1154 = vmatprep.subr.mxu0 0.0
    %1155 = vmatpush2.msra.mxu0 0.0
    %1156 = vmatprep.subr.mxu0 0.0
    %1157 = vmatpush2.msra.mxu0 0.0
    %1158 = vmatprep.subr.mxu0 0.0
    %1159 = vmatpush2.msra.mxu0 0.0
    %1160 = vmatprep.subr.mxu0 0.0
    %1161 = vmatpush2.msra.mxu0 0.0
    %1162 = vmatprep.subr.mxu0 0.0
    %1163 = vmatpush2.msra.mxu0 0.0
    %1164 = vmatprep.subr.mxu0 0.0
    %1165 = vmatpush2.msra.mxu0 0.0
    %1166 = vmatprep.subr.mxu0 0.0
    %1167 = vmatpush2.msra.mxu0 0.0
    %1168 = vmatprep.subr.mxu0 0.0
    %1169 = vmatpush2.msra.mxu0 0.0
    %1170 = vmatprep.subr.mxu0 0.0
    %1171 = vmatpush2.msra.mxu0 0.0
    %1172 = vmatprep.subr.mxu0 0.0
    %1173 = vmatpush2.msra.mxu0 0.0
    %1174 = vmatprep.subr.mxu0 0.0
    %1175 = vmatpush2.msra.mxu0 0.0
    %1176 = vmatprep.subr.mxu0 0.0
    %1177 = vmatpush2.msra.mxu0 0.0
    %1178 = vmatprep.subr.mxu0 0.0
    %1179 = vmatpush2.msra.mxu0 0.0
    %1180 = vmatprep.mubr.f32.mxu0 0.0
    %1181 = vmatmul.mubr.f32.gmra.mxu0 %v1114
    %v1182 = vpop.f32.mrf.mxu0
    %v1183 = vadd.f32 0.0, %v1182
    %v1184 = vpop.f32.mrf.mxu0
    %v1185 = vadd.f32 0.0, %v1184
    %1186 = vdwg.mxu0
    %1187 = vmatprep.subr.mxu0 %v133
    %1188 = vmatpush1.msra.mxu0 %v132
    %1189 = vmatprep.subr.mxu0 %v129
    %1190 = vmatpush1.msra.mxu0 %v128
    %1191 = vmatprep.subr.mxu0 %v125
    %1192 = vmatpush1.msra.mxu0 %v124
    %1193 = vmatprep.subr.mxu0 %v121
    %1194 = vmatpush1.msra.mxu0 %v120
    %1195 = vmatprep.subr.mxu0 %v117
    %1196 = vmatpush1.msra.mxu0 %v116
    %1197 = vmatprep.subr.mxu0 %v113
    %1198 = vmatpush1.msra.mxu0 %v112
    %1199 = vmatprep.subr.mxu0 %v109
    %1200 = vmatpush1.msra.mxu0 %v108
    %1201 = vmatprep.subr.mxu0 %v105
    %1202 = vmatpush1.msra.mxu0 %v104
    %1203 = vmatprep.subr.mxu0 %v101
    %1204 = vmatpush1.msra.mxu0 %v100
    %1205 = vmatprep.subr.mxu0 %v97
    %1206 = vmatpush1.msra.mxu0 %v96
    %1207 = vmatprep.subr.mxu0 %v93
    %1208 = vmatpush1.msra.mxu0 %v92
    %1209 = vmatprep.subr.mxu0 %v89
    %1210 = vmatpush1.msra.mxu0 %v88
    %1211 = vmatprep.subr.mxu0 %v85
    %1212 = vmatpush1.msra.mxu0 %v84
    %1213 = vmatprep.subr.mxu0 %v81
    %1214 = vmatpush1.msra.mxu0 %v80
    %1215 = vmatprep.subr.mxu0 %v77
    %1216 = vmatpush1.msra.mxu0 %v76
    %1217 = vmatprep.subr.mxu0 %v73
    %1218 = vmatpush1.msra.mxu0 %v72
    %1219 = vmatprep.subr.mxu0 0.0
    %1220 = vmatpush2.msra.mxu0 0.0
    %1221 = vmatprep.subr.mxu0 0.0
    %1222 = vmatpush2.msra.mxu0 0.0
    %1223 = vmatprep.subr.mxu0 0.0
    %1224 = vmatpush2.msra.mxu0 0.0
    %1225 = vmatprep.subr.mxu0 0.0
    %1226 = vmatpush2.msra.mxu0 0.0
    %1227 = vmatprep.subr.mxu0 0.0
    %1228 = vmatpush2.msra.mxu0 0.0
    %1229 = vmatprep.subr.mxu0 0.0
    %1230 = vmatpush2.msra.mxu0 0.0
    %1231 = vmatprep.subr.mxu0 0.0
    %1232 = vmatpush2.msra.mxu0 0.0
    %1233 = vmatprep.subr.mxu0 0.0
    %1234 = vmatpush2.msra.mxu0 0.0
    %1235 = vmatprep.subr.mxu0 0.0
    %1236 = vmatpush2.msra.mxu0 0.0
    %1237 = vmatprep.subr.mxu0 0.0
    %1238 = vmatpush2.msra.mxu0 0.0
    %1239 = vmatprep.subr.mxu0 0.0
    %1240 = vmatpush2.msra.mxu0 0.0
    %1241 = vmatprep.subr.mxu0 0.0
    %1242 = vmatpush2.msra.mxu0 0.0
    %1243 = vmatprep.subr.mxu0 0.0
    %1244 = vmatpush2.msra.mxu0 0.0
    %1245 = vmatprep.subr.mxu0 0.0
    %1246 = vmatpush2.msra.mxu0 0.0
    %1247 = vmatprep.subr.mxu0 0.0
    %1248 = vmatpush2.msra.mxu0 0.0
    %1249 = vmatprep.subr.mxu0 0.0
    %1250 = vmatpush2.msra.mxu0 0.0
    %1251 = vmatprep.mubr.f32.mxu0 0.0
    %1252 = vmatmul.mubr.f32.gmra.mxu0 %v1114
    %v1253 = vpop.f32.mrf.mxu0
    %v1254 = vadd.f32 0.0, %v1253
    %v1255 = vpop.f32.mrf.mxu0
    %v1256 = vadd.f32 0.0, %v1255
    %1257 = vdwg.mxu0
    %v1262 = vrot.slane %v1183, 6
    %v1263 = vrot.slane %v1185, 6
    %v1264 = vrot.slane %v1254, 6
    %v1265 = vrot.slane %v1256, 6
    %v1270 = vadd.f32 %v320, %v1262
    %v1271 = vadd.f32 %v322, %v1263
    %v1272 = vadd.f32 %v397, %v1264
    %v1273 = vadd.f32 %v399, %v1265
    %v1274 = vtanh.pop %v1270
    %v1275 = vtanh.pop %v1271
    %v1276 = vtanh.pop %v1272
    %v1277 = vtanh.pop %v1273
    %v1278 = vmul.f32 %v1274, 0.5
    %v1279 = vadd.f32 %v1278, 0.5
    %v1280 = vmul.f32 %v1275, 0.5
    %v1281 = vadd.f32 %v1280, 0.5
    %v1282 = vmul.f32 %v1277, 0.5
    %v1283 = vadd.f32 %v1282, 0.5
    %v1285 = vrot.slane %v1112, 6
    %v1287 = vmul.f32 %v1281, %v1285
    %v1288 = vmul.f32 %v1279, %v1276
    %v1289 = vadd.f32 %v1287, %v1288
    %v1290 = vtanh.pop %v1289
    %v1291 = vmul.f32 %v1283, %v1290
    %1292 = vst [vmem:[#allocation2 + $0x6] sm:$0xc] %v1291
    %v1294 = vrot.slane %v1291, 2
    %1296 = vmatprep.subr.mxu0 %v131
    %1297 = vmatpush1.msra.mxu0 %v130
    %1298 = vmatprep.subr.mxu0 %v127
    %1299 = vmatpush1.msra.mxu0 %v126
    %1300 = vmatprep.subr.mxu0 %v123
    %1301 = vmatpush1.msra.mxu0 %v122
    %1302 = vmatprep.subr.mxu0 %v119
    %1303 = vmatpush1.msra.mxu0 %v118
    %1304 = vmatprep.subr.mxu0 %v115
    %1305 = vmatpush1.msra.mxu0 %v114
    %1306 = vmatprep.subr.mxu0 %v111
    %1307 = vmatpush1.msra.mxu0 %v110
    %1308 = vmatprep.subr.mxu0 %v107
    %1309 = vmatpush1.msra.mxu0 %v106
    %1310 = vmatprep.subr.mxu0 %v103
    %1311 = vmatpush1.msra.mxu0 %v102
    %1312 = vmatprep.subr.mxu0 %v99
    %1313 = vmatpush1.msra.mxu0 %v98
    %1314 = vmatprep.subr.mxu0 %v95
    %1315 = vmatpush1.msra.mxu0 %v94
    %1316 = vmatprep.subr.mxu0 %v91
    %1317 = vmatpush1.msra.mxu0 %v90
    %1318 = vmatprep.subr.mxu0 %v87
    %1319 = vmatpush1.msra.mxu0 %v86
    %1320 = vmatprep.subr.mxu0 %v83
    %1321 = vmatpush1.msra.mxu0 %v82
    %1322 = vmatprep.subr.mxu0 %v79
    %1323 = vmatpush1.msra.mxu0 %v78
    %1324 = vmatprep.subr.mxu0 %v75
    %1325 = vmatpush1.msra.mxu0 %v74
    %1326 = vmatprep.subr.mxu0 %v71
    %1327 = vmatpush1.msra.mxu0 %v70
    %1328 = vmatprep.subr.mxu0 0.0
    %1329 = vmatpush2.msra.mxu0 0.0
    %1330 = vmatprep.subr.mxu0 0.0
    %1331 = vmatpush2.msra.mxu0 0.0
    %1332 = vmatprep.subr.mxu0 0.0
    %1333 = vmatpush2.msra.mxu0 0.0
    %1334 = vmatprep.subr.mxu0 0.0
    %1335 = vmatpush2.msra.mxu0 0.0
    %1336 = vmatprep.subr.mxu0 0.0
    %1337 = vmatpush2.msra.mxu0 0.0
    %1338 = vmatprep.subr.mxu0 0.0
    %1339 = vmatpush2.msra.mxu0 0.0
    %1340 = vmatprep.subr.mxu0 0.0
    %1341 = vmatpush2.msra.mxu0 0.0
    %1342 = vmatprep.subr.mxu0 0.0
    %1343 = vmatpush2.msra.mxu0 0.0
    %1344 = vmatprep.subr.mxu0 0.0
    %1345 = vmatpush2.msra.mxu0 0.0
    %1346 = vmatprep.subr.mxu0 0.0
    %1347 = vmatpush2.msra.mxu0 0.0
    %1348 = vmatprep.subr.mxu0 0.0
    %1349 = vmatpush2.msra.mxu0 0.0
    %1350 = vmatprep.subr.mxu0 0.0
    %1351 = vmatpush2.msra.mxu0 0.0
    %1352 = vmatprep.subr.mxu0 0.0
    %1353 = vmatpush2.msra.mxu0 0.0
    %1354 = vmatprep.subr.mxu0 0.0
    %1355 = vmatpush2.msra.mxu0 0.0
    %1356 = vmatprep.subr.mxu0 0.0
    %1357 = vmatpush2.msra.mxu0 0.0
    %1358 = vmatprep.subr.mxu0 0.0
    %1359 = vmatpush2.msra.mxu0 0.0
    %1360 = vmatprep.mubr.f32.mxu0 0.0
    %1361 = vmatmul.mubr.f32.gmra.mxu0 %v1294
    %v1362 = vpop.f32.mrf.mxu0
    %v1363 = vadd.f32 0.0, %v1362
    %v1364 = vpop.f32.mrf.mxu0
    %v1365 = vadd.f32 0.0, %v1364
    %1366 = vdwg.mxu0
    %1367 = vmatprep.subr.mxu0 %v133
    %1368 = vmatpush1.msra.mxu0 %v132
    %1369 = vmatprep.subr.mxu0 %v129
    %1370 = vmatpush1.msra.mxu0 %v128
    %1371 = vmatprep.subr.mxu0 %v125
    %1372 = vmatpush1.msra.mxu0 %v124
    %1373 = vmatprep.subr.mxu0 %v121
    %1374 = vmatpush1.msra.mxu0 %v120
    %1375 = vmatprep.subr.mxu0 %v117
    %1376 = vmatpush1.msra.mxu0 %v116
    %1377 = vmatprep.subr.mxu0 %v113
    %1378 = vmatpush1.msra.mxu0 %v112
    %1379 = vmatprep.subr.mxu0 %v109
    %1380 = vmatpush1.msra.mxu0 %v108
    %1381 = vmatprep.subr.mxu0 %v105
    %1382 = vmatpush1.msra.mxu0 %v104
    %1383 = vmatprep.subr.mxu0 %v101
    %1384 = vmatpush1.msra.mxu0 %v100
    %1385 = vmatprep.subr.mxu0 %v97
    %1386 = vmatpush1.msra.mxu0 %v96
    %1387 = vmatprep.subr.mxu0 %v93
    %1388 = vmatpush1.msra.mxu0 %v92
    %1389 = vmatprep.subr.mxu0 %v89
    %1390 = vmatpush1.msra.mxu0 %v88
    %1391 = vmatprep.subr.mxu0 %v85
    %1392 = vmatpush1.msra.mxu0 %v84
    %1393 = vmatprep.subr.mxu0 %v81
    %1394 = vmatpush1.msra.mxu0 %v80
    %1395 = vmatprep.subr.mxu0 %v77
    %1396 = vmatpush1.msra.mxu0 %v76
    %1397 = vmatprep.subr.mxu0 %v73
    %1398 = vmatpush1.msra.mxu0 %v72
    %1399 = vmatprep.subr.mxu0 0.0
    %1400 = vmatpush2.msra.mxu0 0.0
    %1401 = vmatprep.subr.mxu0 0.0
    %1402 = vmatpush2.msra.mxu0 0.0
    %1403 = vmatprep.subr.mxu0 0.0
    %1404 = vmatpush2.msra.mxu0 0.0
    %1405 = vmatprep.subr.mxu0 0.0
    %1406 = vmatpush2.msra.mxu0 0.0
    %1407 = vmatprep.subr.mxu0 0.0
    %1408 = vmatpush2.msra.mxu0 0.0
    %1409 = vmatprep.subr.mxu0 0.0
    %1410 = vmatpush2.msra.mxu0 0.0
    %1411 = vmatprep.subr.mxu0 0.0
    %1412 = vmatpush2.msra.mxu0 0.0
    %1413 = vmatprep.subr.mxu0 0.0
    %1414 = vmatpush2.msra.mxu0 0.0
    %1415 = vmatprep.subr.mxu0 0.0
    %1416 = vmatpush2.msra.mxu0 0.0
    %1417 = vmatprep.subr.mxu0 0.0
    %1418 = vmatpush2.msra.mxu0 0.0
    %1419 = vmatprep.subr.mxu0 0.0
    %1420 = vmatpush2.msra.mxu0 0.0
    %1421 = vmatprep.subr.mxu0 0.0
    %1422 = vmatpush2.msra.mxu0 0.0
    %1423 = vmatprep.subr.mxu0 0.0
    %1424 = vmatpush2.msra.mxu0 0.0
    %1425 = vmatprep.subr.mxu0 0.0
    %1426 = vmatpush2.msra.mxu0 0.0
    %1427 = vmatprep.subr.mxu0 0.0
    %1428 = vmatpush2.msra.mxu0 0.0
    %1429 = vmatprep.subr.mxu0 0.0
    %1430 = vmatpush2.msra.mxu0 0.0
    %1431 = vmatprep.mubr.f32.mxu0 0.0
    %1432 = vmatmul.mubr.f32.gmra.mxu0 %v1294
    %v1433 = vpop.f32.mrf.mxu0
    %v1434 = vadd.f32 0.0, %v1433
    %v1435 = vpop.f32.mrf.mxu0
    %v1436 = vadd.f32 0.0, %v1435
    %1437 = vdwg.mxu0
    %v1442 = vrot.slane %v1363, 4
    %v1443 = vrot.slane %v1365, 4
    %v1444 = vrot.slane %v1434, 4
    %v1445 = vrot.slane %v1436, 4
    %v1450 = vadd.f32 %v320, %v1442
    %v1451 = vadd.f32 %v322, %v1443
    %v1452 = vadd.f32 %v397, %v1444
    %v1453 = vadd.f32 %v399, %v1445
    %v1454 = vtanh.pop %v1450
    %v1455 = vtanh.pop %v1451
    %v1456 = vtanh.pop %v1452
    %v1457 = vtanh.pop %v1453
    %v1458 = vmul.f32 %v1454, 0.5
    %v1459 = vadd.f32 %v1458, 0.5
    %v1460 = vmul.f32 %v1455, 0.5
    %v1461 = vadd.f32 %v1460, 0.5
    %v1462 = vmul.f32 %v1457, 0.5
    %v1463 = vadd.f32 %v1462, 0.5
    %v1465 = vrot.slane %v1289, 6
    %v1467 = vmul.f32 %v1461, %v1465
    %v1468 = vmul.f32 %v1459, %v1456
    %v1469 = vadd.f32 %v1467, %v1468
    %v1470 = vtanh.pop %v1469
    %v1471 = vmul.f32 %v1463, %v1470
    %1472 = vst [vmem:[#allocation2 + $0x6] sm:$0x30] %v1471
    %v1474 = vrot.slane %v1471, 4
    %1476 = vmatprep.subr.mxu0 %v131
    %1477 = vmatpush1.msra.mxu0 %v130
    %1478 = vmatprep.subr.mxu0 %v127
    %1479 = vmatpush1.msra.mxu0 %v126
    %1480 = vmatprep.subr.mxu0 %v123
    %1481 = vmatpush1.msra.mxu0 %v122
    %1482 = vmatprep.subr.mxu0 %v119
    %1483 = vmatpush1.msra.mxu0 %v118
    %1484 = vmatprep.subr.mxu0 %v115
    %1485 = vmatpush1.msra.mxu0 %v114
    %1486 = vmatprep.subr.mxu0 %v111
    %1487 = vmatpush1.msra.mxu0 %v110
    %1488 = vmatprep.subr.mxu0 %v107
    %1489 = vmatpush1.msra.mxu0 %v106
    %1490 = vmatprep.subr.mxu0 %v103
    %1491 = vmatpush1.msra.mxu0 %v102
    %1492 = vmatprep.subr.mxu0 %v99
    %1493 = vmatpush1.msra.mxu0 %v98
    %1494 = vmatprep.subr.mxu0 %v95
    %1495 = vmatpush1.msra.mxu0 %v94
    %1496 = vmatprep.subr.mxu0 %v91
    %1497 = vmatpush1.msra.mxu0 %v90
    %1498 = vmatprep.subr.mxu0 %v87
    %1499 = vmatpush1.msra.mxu0 %v86
    %1500 = vmatprep.subr.mxu0 %v83
    %1501 = vmatpush1.msra.mxu0 %v82
    %1502 = vmatprep.subr.mxu0 %v79
    %1503 = vmatpush1.msra.mxu0 %v78
    %1504 = vmatprep.subr.mxu0 %v75
    %1505 = vmatpush1.msra.mxu0 %v74
    %1506 = vmatprep.subr.mxu0 %v71
    %1507 = vmatpush1.msra.mxu0 %v70
    %1508 = vmatprep.subr.mxu0 0.0
    %1509 = vmatpush2.msra.mxu0 0.0
    %1510 = vmatprep.subr.mxu0 0.0
    %1511 = vmatpush2.msra.mxu0 0.0
    %1512 = vmatprep.subr.mxu0 0.0
    %1513 = vmatpush2.msra.mxu0 0.0
    %1514 = vmatprep.subr.mxu0 0.0
    %1515 = vmatpush2.msra.mxu0 0.0
    %1516 = vmatprep.subr.mxu0 0.0
    %1517 = vmatpush2.msra.mxu0 0.0
    %1518 = vmatprep.subr.mxu0 0.0
    %1519 = vmatpush2.msra.mxu0 0.0
    %1520 = vmatprep.subr.mxu0 0.0
    %1521 = vmatpush2.msra.mxu0 0.0
    %1522 = vmatprep.subr.mxu0 0.0
    %1523 = vmatpush2.msra.mxu0 0.0
    %1524 = vmatprep.subr.mxu0 0.0
    %1525 = vmatpush2.msra.mxu0 0.0
    %1526 = vmatprep.subr.mxu0 0.0
    %1527 = vmatpush2.msra.mxu0 0.0
    %1528 = vmatprep.subr.mxu0 0.0
    %1529 = vmatpush2.msra.mxu0 0.0
    %1530 = vmatprep.subr.mxu0 0.0
    %1531 = vmatpush2.msra.mxu0 0.0
    %1532 = vmatprep.subr.mxu0 0.0
    %1533 = vmatpush2.msra.mxu0 0.0
    %1534 = vmatprep.subr.mxu0 0.0
    %1535 = vmatpush2.msra.mxu0 0.0
    %1536 = vmatprep.subr.mxu0 0.0
    %1537 = vmatpush2.msra.mxu0 0.0
    %1538 = vmatprep.subr.mxu0 0.0
    %1539 = vmatpush2.msra.mxu0 0.0
    %1540 = vmatprep.mubr.f32.mxu0 0.0
    %1541 = vmatmul.mubr.f32.gmra.mxu0 %v1474
    %v1542 = vpop.f32.mrf.mxu0
    %v1543 = vadd.f32 0.0, %v1542
    %v1544 = vpop.f32.mrf.mxu0
    %v1545 = vadd.f32 0.0, %v1544
    %1546 = vdwg.mxu0
    %1547 = vmatprep.subr.mxu0 %v133
    %1548 = vmatpush1.msra.mxu0 %v132
    %1549 = vmatprep.subr.mxu0 %v129
    %1550 = vmatpush1.msra.mxu0 %v128
    %1551 = vmatprep.subr.mxu0 %v125
    %1552 = vmatpush1.msra.mxu0 %v124
    %1553 = vmatprep.subr.mxu0 %v121
    %1554 = vmatpush1.msra.mxu0 %v120
    %1555 = vmatprep.subr.mxu0 %v117
    %1556 = vmatpush1.msra.mxu0 %v116
    %1557 = vmatprep.subr.mxu0 %v113
    %1558 = vmatpush1.msra.mxu0 %v112
    %1559 = vmatprep.subr.mxu0 %v109
    %1560 = vmatpush1.msra.mxu0 %v108
    %1561 = vmatprep.subr.mxu0 %v105
    %1562 = vmatpush1.msra.mxu0 %v104
    %1563 = vmatprep.subr.mxu0 %v101
    %1564 = vmatpush1.msra.mxu0 %v100
    %1565 = vmatprep.subr.mxu0 %v97
    %1566 = vmatpush1.msra.mxu0 %v96
    %1567 = vmatprep.subr.mxu0 %v93
    %1568 = vmatpush1.msra.mxu0 %v92
    %1569 = vmatprep.subr.mxu0 %v89
    %1570 = vmatpush1.msra.mxu0 %v88
    %1571 = vmatprep.subr.mxu0 %v85
    %1572 = vmatpush1.msra.mxu0 %v84
    %1573 = vmatprep.subr.mxu0 %v81
    %1574 = vmatpush1.msra.mxu0 %v80
    %1575 = vmatprep.subr.mxu0 %v77
    %1576 = vmatpush1.msra.mxu0 %v76
    %1577 = vmatprep.subr.mxu0 %v73
    %1578 = vmatpush1.msra.mxu0 %v72
    %1579 = vmatprep.subr.mxu0 0.0
    %1580 = vmatpush2.msra.mxu0 0.0
    %1581 = vmatprep.subr.mxu0 0.0
    %1582 = vmatpush2.msra.mxu0 0.0
    %1583 = vmatprep.subr.mxu0 0.0
    %1584 = vmatpush2.msra.mxu0 0.0
    %1585 = vmatprep.subr.mxu0 0.0
    %1586 = vmatpush2.msra.mxu0 0.0
    %1587 = vmatprep.subr.mxu0 0.0
    %1588 = vmatpush2.msra.mxu0 0.0
    %1589 = vmatprep.subr.mxu0 0.0
    %1590 = vmatpush2.msra.mxu0 0.0
    %1591 = vmatprep.subr.mxu0 0.0
    %1592 = vmatpush2.msra.mxu0 0.0
    %1593 = vmatprep.subr.mxu0 0.0
    %1594 = vmatpush2.msra.mxu0 0.0
    %1595 = vmatprep.subr.mxu0 0.0
    %1596 = vmatpush2.msra.mxu0 0.0
    %1597 = vmatprep.subr.mxu0 0.0
    %1598 = vmatpush2.msra.mxu0 0.0
    %1599 = vmatprep.subr.mxu0 0.0
    %1600 = vmatpush2.msra.mxu0 0.0
    %1601 = vmatprep.subr.mxu0 0.0
    %1602 = vmatpush2.msra.mxu0 0.0
    %1603 = vmatprep.subr.mxu0 0.0
    %1604 = vmatpush2.msra.mxu0 0.0
    %1605 = vmatprep.subr.mxu0 0.0
    %1606 = vmatpush2.msra.mxu0 0.0
    %1607 = vmatprep.subr.mxu0 0.0
    %1608 = vmatpush2.msra.mxu0 0.0
    %1609 = vmatprep.subr.mxu0 0.0
    %1610 = vmatpush2.msra.mxu0 0.0
    %1611 = vmatprep.mubr.f32.mxu0 0.0
    %1612 = vmatmul.mubr.f32.gmra.mxu0 %v1474
    %v1613 = vpop.f32.mrf.mxu0
    %v1614 = vadd.f32 0.0, %v1613
    %v1615 = vpop.f32.mrf.mxu0
    %v1616 = vadd.f32 0.0, %v1615
    %1617 = vdwg.mxu0
    %v1622 = vrot.slane %v1543, 2
    %v1623 = vrot.slane %v1545, 2
    %v1624 = vrot.slane %v1614, 2
    %v1625 = vrot.slane %v1616, 2
    %v1630 = vadd.f32 %v320, %v1622
    %v1631 = vadd.f32 %v322, %v1623
    %v1632 = vadd.f32 %v397, %v1624
    %v1633 = vadd.f32 %v399, %v1625
    %v1634 = vtanh.pop %v1630
    %v1635 = vtanh.pop %v1631
    %v1636 = vtanh.pop %v1632
    %v1637 = vtanh.pop %v1633
    %v1638 = vmul.f32 %v1634, 0.5
    %v1639 = vadd.f32 %v1638, 0.5
    %v1640 = vmul.f32 %v1635, 0.5
    %v1641 = vadd.f32 %v1640, 0.5
    %v1642 = vmul.f32 %v1637, 0.5
    %v1643 = vadd.f32 %v1642, 0.5
    %v1645 = vrot.slane %v1469, 6
    %v1647 = vmul.f32 %v1641, %v1645
    %v1648 = vmul.f32 %v1639, %v1636
    %v1649 = vadd.f32 %v1647, %v1648
    %v1650 = vtanh.pop %v1649
    %v1651 = vmul.f32 %v1643, %v1650
    %1652 = vst [vmem:[#allocation2 + $0x6] sm:$0xc0] %v1651
    %v1654 = vlaneseq
    %v1655 = vshrl.u32 %v1654, 7
    %v1656 = vsub.s32 0, %v1655
    %v1657 = vrot.slane %v198, %v1656
    %v1658 = vlaneseq
    %v1659 = vshrl.u32 %v1658, 7
    %v1660 = vsub.s32 2, %v1659
    %v1661 = vrot.slane %v198, %v1660
    %v1662 = vlaneseq
    %v1663 = vshrl.u32 %v1662, 7
    %v1664 = vsub.s32 3, %v1663
    %v1665 = vrot.slane %v198, %v1664
    %v1670 = vrot.slane %v1651, 6
    %1672 = vmatprep.subr.mxu0 %v195
    %1673 = vmatpush1.msra.mxu0 %v194
    %1674 = vmatprep.subr.mxu0 %v191
    %1675 = vmatpush1.msra.mxu0 %v190
    %1676 = vmatprep.subr.mxu0 %v187
    %1677 = vmatpush1.msra.mxu0 %v186
    %1678 = vmatprep.subr.mxu0 %v183
    %1679 = vmatpush1.msra.mxu0 %v182
    %1680 = vmatprep.subr.mxu0 %v179
    %1681 = vmatpush1.msra.mxu0 %v178
    %1682 = vmatprep.subr.mxu0 %v175
    %1683 = vmatpush1.msra.mxu0 %v174
    %1684 = vmatprep.subr.mxu0 %v171
    %1685 = vmatpush1.msra.mxu0 %v170
    %1686 = vmatprep.subr.mxu0 %v167
    %1687 = vmatpush1.msra.mxu0 %v166
    %1688 = vmatprep.subr.mxu0 %v163
    %1689 = vmatpush1.msra.mxu0 %v162
    %1690 = vmatprep.subr.mxu0 %v159
    %1691 = vmatpush1.msra.mxu0 %v158
    %1692 = vmatprep.subr.mxu0 %v155
    %1693 = vmatpush1.msra.mxu0 %v154
    %1694 = vmatprep.subr.mxu0 %v151
    %1695 = vmatpush1.msra.mxu0 %v150
    %1696 = vmatprep.subr.mxu0 %v147
    %1697 = vmatpush1.msra.mxu0 %v146
    %1698 = vmatprep.subr.mxu0 %v143
    %1699 = vmatpush1.msra.mxu0 %v142
    %1700 = vmatprep.subr.mxu0 %v139
    %1701 = vmatpush1.msra.mxu0 %v138
    %1702 = vmatprep.subr.mxu0 %v135
    %1703 = vmatpush1.msra.mxu0 %v134
    %1704 = vmatprep.subr.mxu0 0.0
    %1705 = vmatpush2.msra.mxu0 0.0
    %1706 = vmatprep.subr.mxu0 0.0
    %1707 = vmatpush2.msra.mxu0 0.0
    %1708 = vmatprep.subr.mxu0 0.0
    %1709 = vmatpush2.msra.mxu0 0.0
    %1710 = vmatprep.subr.mxu0 0.0
    %1711 = vmatpush2.msra.mxu0 0.0
    %1712 = vmatprep.subr.mxu0 0.0
    %1713 = vmatpush2.msra.mxu0 0.0
    %1714 = vmatprep.subr.mxu0 0.0
    %1715 = vmatpush2.msra.mxu0 0.0
    %1716 = vmatprep.subr.mxu0 0.0
    %1717 = vmatpush2.msra.mxu0 0.0
    %1718 = vmatprep.subr.mxu0 0.0
    %1719 = vmatpush2.msra.mxu0 0.0
    %1720 = vmatprep.subr.mxu0 0.0
    %1721 = vmatpush2.msra.mxu0 0.0
    %1722 = vmatprep.subr.mxu0 0.0
    %1723 = vmatpush2.msra.mxu0 0.0
    %1724 = vmatprep.subr.mxu0 0.0
    %1725 = vmatpush2.msra.mxu0 0.0
    %1726 = vmatprep.subr.mxu0 0.0
    %1727 = vmatpush2.msra.mxu0 0.0
    %1728 = vmatprep.subr.mxu0 0.0
    %1729 = vmatpush2.msra.mxu0 0.0
    %1730 = vmatprep.subr.mxu0 0.0
    %1731 = vmatpush2.msra.mxu0 0.0
    %1732 = vmatprep.subr.mxu0 0.0
    %1733 = vmatpush2.msra.mxu0 0.0
    %1734 = vmatprep.subr.mxu0 0.0
    %1735 = vmatpush2.msra.mxu0 0.0
    %1736 = vmatprep.mubr.f32.mxu0 0.0
    %1737 = vmatmul.mubr.f32.gmra.mxu0 %v1670
    %v1738 = vpop.f32.mrf.mxu0
    %v1739 = vadd.f32 %v1657, %v1738
    %v1740 = vpop.f32.mrf.mxu0
    %1741 = vdwg.mxu0
    %1742 = vmatprep.subr.mxu0 %v197
    %1743 = vmatpush1.msra.mxu0 %v196
    %1744 = vmatprep.subr.mxu0 %v193
    %1745 = vmatpush1.msra.mxu0 %v192
    %1746 = vmatprep.subr.mxu0 %v189
    %1747 = vmatpush1.msra.mxu0 %v188
    %1748 = vmatprep.subr.mxu0 %v185
    %1749 = vmatpush1.msra.mxu0 %v184
    %1750 = vmatprep.subr.mxu0 %v181
    %1751 = vmatpush1.msra.mxu0 %v180
    %1752 = vmatprep.subr.mxu0 %v177
    %1753 = vmatpush1.msra.mxu0 %v176
    %1754 = vmatprep.subr.mxu0 %v173
    %1755 = vmatpush1.msra.mxu0 %v172
    %1756 = vmatprep.subr.mxu0 %v169
    %1757 = vmatpush1.msra.mxu0 %v168
    %1758 = vmatprep.subr.mxu0 %v165
    %1759 = vmatpush1.msra.mxu0 %v164
    %1760 = vmatprep.subr.mxu0 %v161
    %1761 = vmatpush1.msra.mxu0 %v160
    %1762 = vmatprep.subr.mxu0 %v157
    %1763 = vmatpush1.msra.mxu0 %v156
    %1764 = vmatprep.subr.mxu0 %v153
    %1765 = vmatpush1.msra.mxu0 %v152
    %1766 = vmatprep.subr.mxu0 %v149
    %1767 = vmatpush1.msra.mxu0 %v148
    %1768 = vmatprep.subr.mxu0 %v145
    %1769 = vmatpush1.msra.mxu0 %v144
    %1770 = vmatprep.subr.mxu0 %v141
    %1771 = vmatpush1.msra.mxu0 %v140
    %1772 = vmatprep.subr.mxu0 %v137
    %1773 = vmatpush1.msra.mxu0 %v136
    %1774 = vmatprep.subr.mxu0 0.0
    %1775 = vmatpush2.msra.mxu0 0.0
    %1776 = vmatprep.subr.mxu0 0.0
    %1777 = vmatpush2.msra.mxu0 0.0
    %1778 = vmatprep.subr.mxu0 0.0
    %1779 = vmatpush2.msra.mxu0 0.0
    %1780 = vmatprep.subr.mxu0 0.0
    %1781 = vmatpush2.msra.mxu0 0.0
    %1782 = vmatprep.subr.mxu0 0.0
    %1783 = vmatpush2.msra.mxu0 0.0
    %1784 = vmatprep.subr.mxu0 0.0
    %1785 = vmatpush2.msra.mxu0 0.0
    %1786 = vmatprep.subr.mxu0 0.0
    %1787 = vmatpush2.msra.mxu0 0.0
    %1788 = vmatprep.subr.mxu0 0.0
    %1789 = vmatpush2.msra.mxu0 0.0
    %1790 = vmatprep.subr.mxu0 0.0
    %1791 = vmatpush2.msra.mxu0 0.0
    %1792 = vmatprep.subr.mxu0 0.0
    %1793 = vmatpush2.msra.mxu0 0.0
    %1794 = vmatprep.subr.mxu0 0.0
    %1795 = vmatpush2.msra.mxu0 0.0
    %1796 = vmatprep.subr.mxu0 0.0
    %1797 = vmatpush2.msra.mxu0 0.0
    %1798 = vmatprep.subr.mxu0 0.0
    %1799 = vmatpush2.msra.mxu0 0.0
    %1800 = vmatprep.subr.mxu0 0.0
    %1801 = vmatpush2.msra.mxu0 0.0
    %1802 = vmatprep.subr.mxu0 0.0
    %1803 = vmatpush2.msra.mxu0 0.0
    %1804 = vmatprep.subr.mxu0 0.0
    %1805 = vmatpush2.msra.mxu0 0.0
    %1806 = vmatprep.mubr.f32.mxu0 0.0
    %1807 = vmatmul.mubr.f32.gmra.mxu0 %v1670
    %v1808 = vpop.f32.mrf.mxu0
    %v1809 = vadd.f32 %v1661, %v1808
    %v1810 = vpop.f32.mrf.mxu0
    %v1811 = vadd.f32 %v1665, %v1810
    %1812 = vdwg.mxu0
    %v1813 = vtanh.pop %v1739
    %v1814 = vtanh.pop %v1809
    %v1815 = vtanh.pop %v1811
    %v1816 = vmul.f32 %v1813, 0.5
    %v1817 = vadd.f32 %v1816, 0.5
    %v1818 = vmul.f32 %v1815, 0.5
    %v1819 = vadd.f32 %v1818, 0.5
    %v1820 = vmul.f32 %v1817, %v1814
    %v1821 = vtanh.pop %v1820
    %v1822 = vmul.f32 %v1819, %v1821
    %1823 = vst [vmem:[#allocation2 + $0xe] sm:$0x3] %v1822
    %1824 = vmatprep.subr.mxu0 %v195
    %1825 = vmatpush1.msra.mxu0 %v194
    %1826 = vmatprep.subr.mxu0 %v191
    %1827 = vmatpush1.msra.mxu0 %v190
    %1828 = vmatprep.subr.mxu0 %v187
    %1829 = vmatpush1.msra.mxu0 %v186
    %1830 = vmatprep.subr.mxu0 %v183
    %1831 = vmatpush1.msra.mxu0 %v182
    %1832 = vmatprep.subr.mxu0 %v179
    %1833 = vmatpush1.msra.mxu0 %v178
    %1834 = vmatprep.subr.mxu0 %v175
    %1835 = vmatpush1.msra.mxu0 %v174
    %1836 = vmatprep.subr.mxu0 %v171
    %1837 = vmatpush1.msra.mxu0 %v170
    %1838 = vmatprep.subr.mxu0 %v167
    %1839 = vmatpush1.msra.mxu0 %v166
    %1840 = vmatprep.subr.mxu0 %v163
    %1841 = vmatpush1.msra.mxu0 %v162
    %1842 = vmatprep.subr.mxu0 %v159
    %1843 = vmatpush1.msra.mxu0 %v158
    %1844 = vmatprep.subr.mxu0 %v155
    %1845 = vmatpush1.msra.mxu0 %v154
    %1846 = vmatprep.subr.mxu0 %v151
    %1847 = vmatpush1.msra.mxu0 %v150
    %1848 = vmatprep.subr.mxu0 %v147
    %1849 = vmatpush1.msra.mxu0 %v146
    %1850 = vmatprep.subr.mxu0 %v143
    %1851 = vmatpush1.msra.mxu0 %v142
    %1852 = vmatprep.subr.mxu0 %v139
    %1853 = vmatpush1.msra.mxu0 %v138
    %1854 = vmatprep.subr.mxu0 %v135
    %1855 = vmatpush1.msra.mxu0 %v134
    %1856 = vmatprep.subr.mxu0 0.0
    %1857 = vmatpush2.msra.mxu0 0.0
    %1858 = vmatprep.subr.mxu0 0.0
    %1859 = vmatpush2.msra.mxu0 0.0
    %1860 = vmatprep.subr.mxu0 0.0
    %1861 = vmatpush2.msra.mxu0 0.0
    %1862 = vmatprep.subr.mxu0 0.0
    %1863 = vmatpush2.msra.mxu0 0.0
    %1864 = vmatprep.subr.mxu0 0.0
    %1865 = vmatpush2.msra.mxu0 0.0
    %1866 = vmatprep.subr.mxu0 0.0
    %1867 = vmatpush2.msra.mxu0 0.0
    %1868 = vmatprep.subr.mxu0 0.0
    %1869 = vmatpush2.msra.mxu0 0.0
    %1870 = vmatprep.subr.mxu0 0.0
    %1871 = vmatpush2.msra.mxu0 0.0
    %1872 = vmatprep.subr.mxu0 0.0
    %1873 = vmatpush2.msra.mxu0 0.0
    %1874 = vmatprep.subr.mxu0 0.0
    %1875 = vmatpush2.msra.mxu0 0.0
    %1876 = vmatprep.subr.mxu0 0.0
    %1877 = vmatpush2.msra.mxu0 0.0
    %1878 = vmatprep.subr.mxu0 0.0
    %1879 = vmatpush2.msra.mxu0 0.0
    %1880 = vmatprep.subr.mxu0 0.0
    %1881 = vmatpush2.msra.mxu0 0.0
    %1882 = vmatprep.subr.mxu0 0.0
    %1883 = vmatpush2.msra.mxu0 0.0
    %1884 = vmatprep.subr.mxu0 0.0
    %1885 = vmatpush2.msra.mxu0 0.0
    %1886 = vmatprep.subr.mxu0 0.0
    %1887 = vmatpush2.msra.mxu0 0.0
    %1888 = vmatprep.mubr.f32.mxu0 0.0
    %1889 = vmatmul.mubr.f32.gmra.mxu0 %v1822
    %v1890 = vpop.f32.mrf.mxu0
    %v1891 = vadd.f32 %v1657, %v1890
    %v1892 = vpop.f32.mrf.mxu0
    %1893 = vdwg.mxu0
    %1894 = vmatprep.subr.mxu0 %v197
    %1895 = vmatpush1.msra.mxu0 %v196
    %1896 = vmatprep.subr.mxu0 %v193
    %1897 = vmatpush1.msra.mxu0 %v192
    %1898 = vmatprep.subr.mxu0 %v189
    %1899 = vmatpush1.msra.mxu0 %v188
    %1900 = vmatprep.subr.mxu0 %v185
    %1901 = vmatpush1.msra.mxu0 %v184
    %1902 = vmatprep.subr.mxu0 %v181
    %1903 = vmatpush1.msra.mxu0 %v180
    %1904 = vmatprep.subr.mxu0 %v177
    %1905 = vmatpush1.msra.mxu0 %v176
    %1906 = vmatprep.subr.mxu0 %v173
    %1907 = vmatpush1.msra.mxu0 %v172
    %1908 = vmatprep.subr.mxu0 %v169
    %1909 = vmatpush1.msra.mxu0 %v168
    %1910 = vmatprep.subr.mxu0 %v165
    %1911 = vmatpush1.msra.mxu0 %v164
    %1912 = vmatprep.subr.mxu0 %v161
    %1913 = vmatpush1.msra.mxu0 %v160
    %1914 = vmatprep.subr.mxu0 %v157
    %1915 = vmatpush1.msra.mxu0 %v156
    %1916 = vmatprep.subr.mxu0 %v153
    %1917 = vmatpush1.msra.mxu0 %v152
    %1918 = vmatprep.subr.mxu0 %v149
    %1919 = vmatpush1.msra.mxu0 %v148
    %1920 = vmatprep.subr.mxu0 %v145
    %1921 = vmatpush1.msra.mxu0 %v144
    %1922 = vmatprep.subr.mxu0 %v141
    %1923 = vmatpush1.msra.mxu0 %v140
    %1924 = vmatprep.subr.mxu0 %v137
    %1925 = vmatpush1.msra.mxu0 %v136
    %1926 = vmatprep.subr.mxu0 0.0
    %1927 = vmatpush2.msra.mxu0 0.0
    %1928 = vmatprep.subr.mxu0 0.0
    %1929 = vmatpush2.msra.mxu0 0.0
    %1930 = vmatprep.subr.mxu0 0.0
    %1931 = vmatpush2.msra.mxu0 0.0
    %1932 = vmatprep.subr.mxu0 0.0
    %1933 = vmatpush2.msra.mxu0 0.0
    %1934 = vmatprep.subr.mxu0 0.0
    %1935 = vmatpush2.msra.mxu0 0.0
    %1936 = vmatprep.subr.mxu0 0.0
    %1937 = vmatpush2.msra.mxu0 0.0
    %1938 = vmatprep.subr.mxu0 0.0
    %1939 = vmatpush2.msra.mxu0 0.0
    %1940 = vmatprep.subr.mxu0 0.0
    %1941 = vmatpush2.msra.mxu0 0.0
    %1942 = vmatprep.subr.mxu0 0.0
    %1943 = vmatpush2.msra.mxu0 0.0
    %1944 = vmatprep.subr.mxu0 0.0
    %1945 = vmatpush2.msra.mxu0 0.0
    %1946 = vmatprep.subr.mxu0 0.0
    %1947 = vmatpush2.msra.mxu0 0.0
    %1948 = vmatprep.subr.mxu0 0.0
    %1949 = vmatpush2.msra.mxu0 0.0
    %1950 = vmatprep.subr.mxu0 0.0
    %1951 = vmatpush2.msra.mxu0 0.0
    %1952 = vmatprep.subr.mxu0 0.0
    %1953 = vmatpush2.msra.mxu0 0.0
    %1954 = vmatprep.subr.mxu0 0.0
    %1955 = vmatpush2.msra.mxu0 0.0
    %1956 = vmatprep.subr.mxu0 0.0
    %1957 = vmatpush2.msra.mxu0 0.0
    %1958 = vmatprep.mubr.f32.mxu0 0.0
    %1959 = vmatmul.mubr.f32.gmra.mxu0 %v1822
    %v1960 = vpop.f32.mrf.mxu0
    %v1961 = vadd.f32 %v1661, %v1960
    %v1962 = vpop.f32.mrf.mxu0
    %v1963 = vadd.f32 %v1665, %v1962
    %1964 = vdwg.mxu0
    %v1965 = vtanh.pop %v1891
    %v1966 = vtanh.pop %v1961
    %v1967 = vtanh.pop %v1963
    %v1968 = vmul.f32 %v1965, 0.5
    %v1969 = vadd.f32 %v1968, 0.5
    %v1970 = vmul.f32 %v1967, 0.5
    %v1971 = vadd.f32 %v1970, 0.5
    %v1972 = vmul.f32 %v1969, %v1966
    %v1973 = vtanh.pop %v1972
    %v1974 = vmul.f32 %v1971, %v1973
    %1975 = vst [vmem:[#allocation2 + $0x10] sm:$0x3] %v1974
    %1976 = vmatprep.subr.mxu0 %v195
    %1977 = vmatpush1.msra.mxu0 %v194
    %1978 = vmatprep.subr.mxu0 %v191
    %1979 = vmatpush1.msra.mxu0 %v190
    %1980 = vmatprep.subr.mxu0 %v187
    %1981 = vmatpush1.msra.mxu0 %v186
    %1982 = vmatprep.subr.mxu0 %v183
    %1983 = vmatpush1.msra.mxu0 %v182
    %1984 = vmatprep.subr.mxu0 %v179
    %1985 = vmatpush1.msra.mxu0 %v178
    %1986 = vmatprep.subr.mxu0 %v175
    %1987 = vmatpush1.msra.mxu0 %v174
    %1988 = vmatprep.subr.mxu0 %v171
    %1989 = vmatpush1.msra.mxu0 %v170
    %1990 = vmatprep.subr.mxu0 %v167
    %1991 = vmatpush1.msra.mxu0 %v166
    %1992 = vmatprep.subr.mxu0 %v163
    %1993 = vmatpush1.msra.mxu0 %v162
    %1994 = vmatprep.subr.mxu0 %v159
    %1995 = vmatpush1.msra.mxu0 %v158
    %1996 = vmatprep.subr.mxu0 %v155
    %1997 = vmatpush1.msra.mxu0 %v154
    %1998 = vmatprep.subr.mxu0 %v151
    %1999 = vmatpush1.msra.mxu0 %v150
    %2000 = vmatprep.subr.mxu0 %v147
    %2001 = vmatpush1.msra.mxu0 %v146
    %2002 = vmatprep.subr.mxu0 %v143
    %2003 = vmatpush1.msra.mxu0 %v142
    %2004 = vmatprep.subr.mxu0 %v139
    %2005 = vmatpush1.msra.mxu0 %v138
    %2006 = vmatprep.subr.mxu0 %v135
    %2007 = vmatpush1.msra.mxu0 %v134
    %2008 = vmatprep.subr.mxu0 0.0
    %2009 = vmatpush2.msra.mxu0 0.0
    %2010 = vmatprep.subr.mxu0 0.0
    %2011 = vmatpush2.msra.mxu0 0.0
    %2012 = vmatprep.subr.mxu0 0.0
    %2013 = vmatpush2.msra.mxu0 0.0
    %2014 = vmatprep.subr.mxu0 0.0
    %2015 = vmatpush2.msra.mxu0 0.0
    %2016 = vmatprep.subr.mxu0 0.0
    %2017 = vmatpush2.msra.mxu0 0.0
    %2018 = vmatprep.subr.mxu0 0.0
    %2019 = vmatpush2.msra.mxu0 0.0
    %2020 = vmatprep.subr.mxu0 0.0
    %2021 = vmatpush2.msra.mxu0 0.0
    %2022 = vmatprep.subr.mxu0 0.0
    %2023 = vmatpush2.msra.mxu0 0.0
    %2024 = vmatprep.subr.mxu0 0.0
    %2025 = vmatpush2.msra.mxu0 0.0
    %2026 = vmatprep.subr.mxu0 0.0
    %2027 = vmatpush2.msra.mxu0 0.0
    %2028 = vmatprep.subr.mxu0 0.0
    %2029 = vmatpush2.msra.mxu0 0.0
    %2030 = vmatprep.subr.mxu0 0.0
    %2031 = vmatpush2.msra.mxu0 0.0
    %2032 = vmatprep.subr.mxu0 0.0
    %2033 = vmatpush2.msra.mxu0 0.0
    %2034 = vmatprep.subr.mxu0 0.0
    %2035 = vmatpush2.msra.mxu0 0.0
    %2036 = vmatprep.subr.mxu0 0.0
    %2037 = vmatpush2.msra.mxu0 0.0
    %2038 = vmatprep.subr.mxu0 0.0
    %2039 = vmatpush2.msra.mxu0 0.0
    %2040 = vmatprep.mubr.f32.mxu0 0.0
    %2041 = vmatmul.mubr.f32.gmra.mxu0 %v1974
    %v2042 = vpop.f32.mrf.mxu0
    %v2043 = vadd.f32 %v1657, %v2042
    %v2044 = vpop.f32.mrf.mxu0
    %2045 = vdwg.mxu0
    %2046 = vmatprep.subr.mxu0 %v197
    %2047 = vmatpush1.msra.mxu0 %v196
    %2048 = vmatprep.subr.mxu0 %v193
    %2049 = vmatpush1.msra.mxu0 %v192
    %2050 = vmatprep.subr.mxu0 %v189
    %2051 = vmatpush1.msra.mxu0 %v188
    %2052 = vmatprep.subr.mxu0 %v185
    %2053 = vmatpush1.msra.mxu0 %v184
    %2054 = vmatprep.subr.mxu0 %v181
    %2055 = vmatpush1.msra.mxu0 %v180
    %2056 = vmatprep.subr.mxu0 %v177
    %2057 = vmatpush1.msra.mxu0 %v176
    %2058 = vmatprep.subr.mxu0 %v173
    %2059 = vmatpush1.msra.mxu0 %v172
    %2060 = vmatprep.subr.mxu0 %v169
    %2061 = vmatpush1.msra.mxu0 %v168
    %2062 = vmatprep.subr.mxu0 %v165
    %2063 = vmatpush1.msra.mxu0 %v164
    %2064 = vmatprep.subr.mxu0 %v161
    %2065 = vmatpush1.msra.mxu0 %v160
    %2066 = vmatprep.subr.mxu0 %v157
    %2067 = vmatpush1.msra.mxu0 %v156
    %2068 = vmatprep.subr.mxu0 %v153
    %2069 = vmatpush1.msra.mxu0 %v152
    %2070 = vmatprep.subr.mxu0 %v149
    %2071 = vmatpush1.msra.mxu0 %v148
    %2072 = vmatprep.subr.mxu0 %v145
    %2073 = vmatpush1.msra.mxu0 %v144
    %2074 = vmatprep.subr.mxu0 %v141
    %2075 = vmatpush1.msra.mxu0 %v140
    %2076 = vmatprep.subr.mxu0 %v137
    %2077 = vmatpush1.msra.mxu0 %v136
    %2078 = vmatprep.subr.mxu0 0.0
    %2079 = vmatpush2.msra.mxu0 0.0
    %2080 = vmatprep.subr.mxu0 0.0
    %2081 = vmatpush2.msra.mxu0 0.0
    %2082 = vmatprep.subr.mxu0 0.0
    %2083 = vmatpush2.msra.mxu0 0.0
    %2084 = vmatprep.subr.mxu0 0.0
    %2085 = vmatpush2.msra.mxu0 0.0
    %2086 = vmatprep.subr.mxu0 0.0
    %2087 = vmatpush2.msra.mxu0 0.0
    %2088 = vmatprep.subr.mxu0 0.0
    %2089 = vmatpush2.msra.mxu0 0.0
    %2090 = vmatprep.subr.mxu0 0.0
    %2091 = vmatpush2.msra.mxu0 0.0
    %2092 = vmatprep.subr.mxu0 0.0
    %2093 = vmatpush2.msra.mxu0 0.0
    %2094 = vmatprep.subr.mxu0 0.0
    %2095 = vmatpush2.msra.mxu0 0.0
    %2096 = vmatprep.subr.mxu0 0.0
    %2097 = vmatpush2.msra.mxu0 0.0
    %2098 = vmatprep.subr.mxu0 0.0
    %2099 = vmatpush2.msra.mxu0 0.0
    %2100 = vmatprep.subr.mxu0 0.0
    %2101 = vmatpush2.msra.mxu0 0.0
    %2102 = vmatprep.subr.mxu0 0.0
    %2103 = vmatpush2.msra.mxu0 0.0
    %2104 = vmatprep.subr.mxu0 0.0
    %2105 = vmatpush2.msra.mxu0 0.0
    %2106 = vmatprep.subr.mxu0 0.0
    %2107 = vmatpush2.msra.mxu0 0.0
    %2108 = vmatprep.subr.mxu0 0.0
    %2109 = vmatpush2.msra.mxu0 0.0
    %2110 = vmatprep.mubr.f32.mxu0 0.0
    %2111 = vmatmul.mubr.f32.gmra.mxu0 %v1974
    %v2112 = vpop.f32.mrf.mxu0
    %v2113 = vadd.f32 %v1661, %v2112
    %v2114 = vpop.f32.mrf.mxu0
    %v2115 = vadd.f32 %v1665, %v2114
    %2116 = vdwg.mxu0
    %v2117 = vtanh.pop %v2043
    %v2118 = vtanh.pop %v2113
    %v2119 = vtanh.pop %v2115
    %v2120 = vmul.f32 %v2117, 0.5
    %v2121 = vadd.f32 %v2120, 0.5
    %v2122 = vmul.f32 %v2119, 0.5
    %v2123 = vadd.f32 %v2122, 0.5
    %v2124 = vmul.f32 %v2121, %v2118
    %v2125 = vtanh.pop %v2124
    %v2126 = vmul.f32 %v2123, %v2125
    %2127 = vst [vmem:[#allocation2 + $0x12] sm:$0x3] %v2126
    %2128 = vmatprep.subr.mxu0 %v195
    %2129 = vmatpush1.msra.mxu0 %v194
    %2130 = vmatprep.subr.mxu0 %v191
    %2131 = vmatpush1.msra.mxu0 %v190
    %2132 = vmatprep.subr.mxu0 %v187
    %2133 = vmatpush1.msra.mxu0 %v186
    %2134 = vmatprep.subr.mxu0 %v183
    %2135 = vmatpush1.msra.mxu0 %v182
    %2136 = vmatprep.subr.mxu0 %v179
    %2137 = vmatpush1.msra.mxu0 %v178
    %2138 = vmatprep.subr.mxu0 %v175
    %2139 = vmatpush1.msra.mxu0 %v174
    %2140 = vmatprep.subr.mxu0 %v171
    %2141 = vmatpush1.msra.mxu0 %v170
    %2142 = vmatprep.subr.mxu0 %v167
    %2143 = vmatpush1.msra.mxu0 %v166
    %2144 = vmatprep.subr.mxu0 %v163
    %2145 = vmatpush1.msra.mxu0 %v162
    %2146 = vmatprep.subr.mxu0 %v159
    %2147 = vmatpush1.msra.mxu0 %v158
    %2148 = vmatprep.subr.mxu0 %v155
    %2149 = vmatpush1.msra.mxu0 %v154
    %2150 = vmatprep.subr.mxu0 %v151
    %2151 = vmatpush1.msra.mxu0 %v150
    %2152 = vmatprep.subr.mxu0 %v147
    %2153 = vmatpush1.msra.mxu0 %v146
    %2154 = vmatprep.subr.mxu0 %v143
    %2155 = vmatpush1.msra.mxu0 %v142
    %2156 = vmatprep.subr.mxu0 %v139
    %2157 = vmatpush1.msra.mxu0 %v138
    %2158 = vmatprep.subr.mxu0 %v135
    %2159 = vmatpush1.msra.mxu0 %v134
    %2160 = vmatprep.subr.mxu0 0.0
    %2161 = vmatpush2.msra.mxu0 0.0
    %2162 = vmatprep.subr.mxu0 0.0
    %2163 = vmatpush2.msra.mxu0 0.0
    %2164 = vmatprep.subr.mxu0 0.0
    %2165 = vmatpush2.msra.mxu0 0.0
    %2166 = vmatprep.subr.mxu0 0.0
    %2167 = vmatpush2.msra.mxu0 0.0
    %2168 = vmatprep.subr.mxu0 0.0
    %2169 = vmatpush2.msra.mxu0 0.0
    %2170 = vmatprep.subr.mxu0 0.0
    %2171 = vmatpush2.msra.mxu0 0.0
    %2172 = vmatprep.subr.mxu0 0.0
    %2173 = vmatpush2.msra.mxu0 0.0
    %2174 = vmatprep.subr.mxu0 0.0
    %2175 = vmatpush2.msra.mxu0 0.0
    %2176 = vmatprep.subr.mxu0 0.0
    %2177 = vmatpush2.msra.mxu0 0.0
    %2178 = vmatprep.subr.mxu0 0.0
    %2179 = vmatpush2.msra.mxu0 0.0
    %2180 = vmatprep.subr.mxu0 0.0
    %2181 = vmatpush2.msra.mxu0 0.0
    %2182 = vmatprep.subr.mxu0 0.0
    %2183 = vmatpush2.msra.mxu0 0.0
    %2184 = vmatprep.subr.mxu0 0.0
    %2185 = vmatpush2.msra.mxu0 0.0
    %2186 = vmatprep.subr.mxu0 0.0
    %2187 = vmatpush2.msra.mxu0 0.0
    %2188 = vmatprep.subr.mxu0 0.0
    %2189 = vmatpush2.msra.mxu0 0.0
    %2190 = vmatprep.subr.mxu0 0.0
    %2191 = vmatpush2.msra.mxu0 0.0
    %2192 = vmatprep.mubr.f32.mxu0 0.0
    %2193 = vmatmul.mubr.f32.gmra.mxu0 %v2126
    %v2194 = vpop.f32.mrf.mxu0
    %v2195 = vadd.f32 %v1657, %v2194
    %v2196 = vpop.f32.mrf.mxu0
    %2197 = vdwg.mxu0
    %2198 = vmatprep.subr.mxu0 %v197
    %2199 = vmatpush1.msra.mxu0 %v196
    %2200 = vmatprep.subr.mxu0 %v193
    %2201 = vmatpush1.msra.mxu0 %v192
    %2202 = vmatprep.subr.mxu0 %v189
    %2203 = vmatpush1.msra.mxu0 %v188
    %2204 = vmatprep.subr.mxu0 %v185
    %2205 = vmatpush1.msra.mxu0 %v184
    %2206 = vmatprep.subr.mxu0 %v181
    %2207 = vmatpush1.msra.mxu0 %v180
    %2208 = vmatprep.subr.mxu0 %v177
    %2209 = vmatpush1.msra.mxu0 %v176
    %2210 = vmatprep.subr.mxu0 %v173
    %2211 = vmatpush1.msra.mxu0 %v172
    %2212 = vmatprep.subr.mxu0 %v169
    %2213 = vmatpush1.msra.mxu0 %v168
    %2214 = vmatprep.subr.mxu0 %v165
    %2215 = vmatpush1.msra.mxu0 %v164
    %2216 = vmatprep.subr.mxu0 %v161
    %2217 = vmatpush1.msra.mxu0 %v160
    %2218 = vmatprep.subr.mxu0 %v157
    %2219 = vmatpush1.msra.mxu0 %v156
    %2220 = vmatprep.subr.mxu0 %v153
    %2221 = vmatpush1.msra.mxu0 %v152
    %2222 = vmatprep.subr.mxu0 %v149
    %2223 = vmatpush1.msra.mxu0 %v148
    %2224 = vmatprep.subr.mxu0 %v145
    %2225 = vmatpush1.msra.mxu0 %v144
    %2226 = vmatprep.subr.mxu0 %v141
    %2227 = vmatpush1.msra.mxu0 %v140
    %2228 = vmatprep.subr.mxu0 %v137
    %2229 = vmatpush1.msra.mxu0 %v136
    %2230 = vmatprep.subr.mxu0 0.0
    %2231 = vmatpush2.msra.mxu0 0.0
    %2232 = vmatprep.subr.mxu0 0.0
    %2233 = vmatpush2.msra.mxu0 0.0
    %2234 = vmatprep.subr.mxu0 0.0
    %2235 = vmatpush2.msra.mxu0 0.0
    %2236 = vmatprep.subr.mxu0 0.0
    %2237 = vmatpush2.msra.mxu0 0.0
    %2238 = vmatprep.subr.mxu0 0.0
    %2239 = vmatpush2.msra.mxu0 0.0
    %2240 = vmatprep.subr.mxu0 0.0
    %2241 = vmatpush2.msra.mxu0 0.0
    %2242 = vmatprep.subr.mxu0 0.0
    %2243 = vmatpush2.msra.mxu0 0.0
    %2244 = vmatprep.subr.mxu0 0.0
    %2245 = vmatpush2.msra.mxu0 0.0
    %2246 = vmatprep.subr.mxu0 0.0
    %2247 = vmatpush2.msra.mxu0 0.0
    %2248 = vmatprep.subr.mxu0 0.0
    %2249 = vmatpush2.msra.mxu0 0.0
    %2250 = vmatprep.subr.mxu0 0.0
    %2251 = vmatpush2.msra.mxu0 0.0
    %2252 = vmatprep.subr.mxu0 0.0
    %2253 = vmatpush2.msra.mxu0 0.0
    %2254 = vmatprep.subr.mxu0 0.0
    %2255 = vmatpush2.msra.mxu0 0.0
    %2256 = vmatprep.subr.mxu0 0.0
    %2257 = vmatpush2.msra.mxu0 0.0
    %2258 = vmatprep.subr.mxu0 0.0
    %2259 = vmatpush2.msra.mxu0 0.0
    %2260 = vmatprep.subr.mxu0 0.0
    %2261 = vmatpush2.msra.mxu0 0.0
    %2262 = vmatprep.mubr.f32.mxu0 0.0
    %2263 = vmatmul.mubr.f32.gmra.mxu0 %v2126
    %v2264 = vpop.f32.mrf.mxu0
    %v2265 = vadd.f32 %v1661, %v2264
    %v2266 = vpop.f32.mrf.mxu0
    %v2267 = vadd.f32 %v1665, %v2266
    %2268 = vdwg.mxu0
    %v2269 = vtanh.pop %v2195
    %v2270 = vtanh.pop %v2265
    %v2271 = vtanh.pop %v2267
    %v2272 = vmul.f32 %v2269, 0.5
    %v2273 = vadd.f32 %v2272, 0.5
    %v2274 = vmul.f32 %v2271, 0.5
    %v2275 = vadd.f32 %v2274, 0.5
    %v2276 = vmul.f32 %v2273, %v2270
    %v2277 = vtanh.pop %v2276
    %v2278 = vmul.f32 %v2275, %v2277
    %2279 = vst [vmem:[#allocation2 + $0x14] sm:$0x3] %v2278
    %v2280 = vld [vmem:[#allocation2] sm:$0xff]
    %v2281 = vld [vmem:[#allocation2 + $0x8] sm:$0xff]
    %v2282 = vld [vmem:[#allocation2 + $0x10] sm:$0x3f]
    %v2283 = vld [vmem:[#allocation7] sm:$0xff]
    %v2284 = vld [vmem:[#allocation7 + $0x8] sm:$0xff]
    %v2285 = vld [vmem:[#allocation7 + $0x10] sm:$0xff]
    %v2286 = vld [vmem:[#allocation7 + $0x18] sm:$0xff]
    %v2287 = vld [vmem:[#allocation7 + $0x20] sm:$0xff]
    %v2288 = vld [vmem:[#allocation7 + $0x28] sm:$0xff]
    %v2289 = vld [vmem:[#allocation7 + $0x30] sm:$0xff]
    %v2290 = vld [vmem:[#allocation7 + $0x38] sm:$0xff]
    %v2291 = vld [vmem:[#allocation7 + $0x40] sm:$0xff]
    %v2292 = vld [vmem:[#allocation7 + $0x48] sm:$0xff]
    %v2293 = vld [vmem:[#allocation7 + $0x50] sm:$0xff]
    %v2294 = vld [vmem:[#allocation7 + $0x58] sm:$0xff]
    %v2295 = vld [vmem:[#allocation7 + $0x60] sm:$0xff]
    %v2296 = vld [vmem:[#allocation7 + $0x68] sm:$0xff]
    %v2297 = vld [vmem:[#allocation7 + $0x70] sm:$0xff]
    %v2298 = vld [vmem:[#allocation7 + $0x78] sm:$0xff]
    %v2299 = vld [vmem:[%s7] sm:$0x1]
    %v2301 = vlaneseq
    %v2302 = vshrl.u32 %v2301, 7
    %v2303 = vsub.s32 0, %v2302
    %v2304 = vrot.slane %v2299, %v2303
    %2306 = vmatprep.subr.mxu0 0.0
    %2307 = vmatpush1.msra.mxu0 %v2298
    %2308 = vmatprep.subr.mxu0 0.0
    %2309 = vmatpush1.msra.mxu0 %v2297
    %2310 = vmatprep.subr.mxu0 0.0
    %2311 = vmatpush1.msra.mxu0 %v2296
    %2312 = vmatprep.subr.mxu0 0.0
    %2313 = vmatpush1.msra.mxu0 %v2295
    %2314 = vmatprep.subr.mxu0 0.0
    %2315 = vmatpush1.msra.mxu0 %v2294
    %2316 = vmatprep.subr.mxu0 0.0
    %2317 = vmatpush1.msra.mxu0 %v2293
    %2318 = vmatprep.subr.mxu0 0.0
    %2319 = vmatpush1.msra.mxu0 %v2292
    %2320 = vmatprep.subr.mxu0 0.0
    %2321 = vmatpush1.msra.mxu0 %v2291
    %2322 = vmatprep.subr.mxu0 0.0
    %2323 = vmatpush1.msra.mxu0 %v2290
    %2324 = vmatprep.subr.mxu0 0.0
    %2325 = vmatpush1.msra.mxu0 %v2289
    %2326 = vmatprep.subr.mxu0 0.0
    %2327 = vmatpush1.msra.mxu0 %v2288
    %2328 = vmatprep.subr.mxu0 0.0
    %2329 = vmatpush1.msra.mxu0 %v2287
    %2330 = vmatprep.subr.mxu0 0.0
    %2331 = vmatpush1.msra.mxu0 %v2286
    %2332 = vmatprep.subr.mxu0 0.0
    %2333 = vmatpush1.msra.mxu0 %v2285
    %2334 = vmatprep.subr.mxu0 0.0
    %2335 = vmatpush1.msra.mxu0 %v2284
    %2336 = vmatprep.subr.mxu0 0.0
    %2337 = vmatpush1.msra.mxu0 %v2283
    %2338 = vmatprep.subr.mxu0 0.0
    %2339 = vmatpush2.msra.mxu0 0.0
    %2340 = vmatprep.subr.mxu0 0.0
    %2341 = vmatpush2.msra.mxu0 0.0
    %2342 = vmatprep.subr.mxu0 0.0
    %2343 = vmatpush2.msra.mxu0 0.0
    %2344 = vmatprep.subr.mxu0 0.0
    %2345 = vmatpush2.msra.mxu0 0.0
    %2346 = vmatprep.subr.mxu0 0.0
    %2347 = vmatpush2.msra.mxu0 0.0
    %2348 = vmatprep.subr.mxu0 0.0
    %2349 = vmatpush2.msra.mxu0 0.0
    %2350 = vmatprep.subr.mxu0 0.0
    %2351 = vmatpush2.msra.mxu0 0.0
    %2352 = vmatprep.subr.mxu0 0.0
    %2353 = vmatpush2.msra.mxu0 0.0
    %2354 = vmatprep.subr.mxu0 0.0
    %2355 = vmatpush2.msra.mxu0 0.0
    %2356 = vmatprep.subr.mxu0 0.0
    %2357 = vmatpush2.msra.mxu0 0.0
    %2358 = vmatprep.subr.mxu0 0.0
    %2359 = vmatpush2.msra.mxu0 0.0
    %2360 = vmatprep.subr.mxu0 0.0
    %2361 = vmatpush2.msra.mxu0 0.0
    %2362 = vmatprep.subr.mxu0 0.0
    %2363 = vmatpush2.msra.mxu0 0.0
    %2364 = vmatprep.subr.mxu0 0.0
    %2365 = vmatpush2.msra.mxu0 0.0
    %2366 = vmatprep.subr.mxu0 0.0
    %2367 = vmatpush2.msra.mxu0 0.0
    %2368 = vmatprep.subr.mxu0 0.0
    %2369 = vmatpush2.msra.mxu0 0.0
    %2370 = vmatprep.mubr.f32.mxu0 0.0
    %2371 = vmatmul.mubr.f32.gmra.mxu0 %v2280
    %v2372 = vpop.f32.mrf.mxu0
    %v2373 = vadd.f32 %v2304, %v2372
    %v2374 = vpop.f32.mrf.mxu0
    %2375 = vmatprep.mubr.f32.mxu0 0.0
    %2376 = vmatmul.mubr.f32.gmra.mxu0 %v2281
    %v2377 = vpop.f32.mrf.mxu0
    %v2378 = vadd.f32 %v2304, %v2377
    %v2379 = vpop.f32.mrf.mxu0
    %2380 = vmatprep.mubr.f32.mxu0 0.0
    %2381 = vmatmul.mubr.f32.gmra.mxu0 %v2282
    %v2382 = vpop.f32.mrf.mxu0
    %v2383 = vadd.f32 %v2304, %v2382
    %v2384 = vpop.f32.mrf.mxu0
    %2385 = vdwg.mxu0
    %2386 = vst [vmem:[%s8] sm:$0xff] %v2373
    %2387 = vst [vmem:[%s8 + $0x8] sm:$0xff] %v2378
    %2388 = vst [vmem:[%s8 + $0x10] sm:$0x3f] %v2383
    // Predicated region
    $region46: #{model_forward.1} parent=1 // pred_check
      _
    $region47: #{model_forward.1} parent=1 // pred_check_branch
      %2390 = sbr.rel (0) target = $region49
    $region48: #{model_forward.1} parent=1 // pred_region
      _
    $region49: #{model_forward.1} parent=1 // pred_fallthru
      _
    // Predicated region
    $region50: #{model_forward.1} parent=1 // pred_check
      _
    $region51: #{model_forward.1} parent=1 // pred_check_branch
      %2392 = sbr.rel (0) target = $region53
    $region52: #{model_forward.1} parent=1 // pred_region
      _
    $region53: #{model_forward.1} parent=1 // pred_fallthru
      _
    %2393 = vsyncpa [#allocation4], 1
    %2394 = vsyncpa [#allocation6], 1

</llo_original>
